<compile_context>
chip_gen: v7x
topology: tpu7x:2x2x1
jax: 0.10.0
libtpu: 0.0.40
codegen_flags: <defaults>
</compile_context>

<pallas_src>
import functools

import jax
import jax.numpy as jnp
from jax import lax
from jax.experimental import pallas as pl
from jax.experimental.pallas import tpu as pltpu


# ----------------------------- Pallas kernel --------------------------------

def _bilstm_kernel(x_ref,        # (T, B, E)  full sequence in VMEM
                   lohi_ref,     # (2B, 2) int32  per-stacked-row [lo, hi) step window
                   wf_ref,       # (E+H, 4H) fused fwd weights [W_ih; W_hh]
                   wb_ref,       # (E+H, 4H) fused bwd weights
                   bias_ref,     # (2B, 4H)  per-row bias (rows 0:B fwd, B:2B bwd)
                   out_ref):     # (T, 2B, H) out[s, :B]=fwd@t=s, out[s, B:]=bwd@t=T-1-s
    T, B, E = x_ref.shape
    H = out_ref.shape[-1]

    # Loop-invariant loads (held in vregs for the whole recurrence).
    lohi = lohi_ref[...]
    lo = lohi[:, 0:1]                       # (2B, 1)
    hi = lohi[:, 1:2]                       # (2B, 1)
    wf = wf_ref[...]
    wb = wb_ref[...]
    bias = bias_ref[...]

    def step(s, carry):
        h, c = carry                        # (2B, H) f32 each; rows 0:B fwd, B:2B bwd
        x_f = x_ref[s]                      # (B, E)  forward time index s
        x_b = x_ref[T - 1 - s]              # (B, E)  backward time index T-1-s

        # One fused (x, h) matmul per direction.
        g_f = jnp.dot(jnp.concatenate([x_f, h[:B]], axis=1), wf,
                      preferred_element_type=jnp.float32)          # (B, 4H)
        g_b = jnp.dot(jnp.concatenate([x_b, h[B:]], axis=1), wb,
                      preferred_element_type=jnp.float32)          # (B, 4H)
        gates = jnp.concatenate([g_f, g_b], axis=0) + bias         # (2B, 4H) = (8, 128)

        i = jax.nn.sigmoid(gates[:, 0 * H:1 * H])
        f = jax.nn.sigmoid(gates[:, 1 * H:2 * H])
        g = jnp.tanh(gates[:, 2 * H:3 * H])
        o = jax.nn.sigmoid(gates[:, 3 * H:4 * H])
        c_new = f * c + i * g
        h_new = o * jnp.tanh(c_new)

        # Packed-sequence masking: freeze state / zero output outside window.
        mask = jnp.logical_and(s >= lo, s < hi)                    # (2B, 1)
        h = jnp.where(mask, h_new, h)
        c = jnp.where(mask, c_new, c)
        out_ref[s] = jnp.where(mask, h_new, 0.0)                   # (2B, H)
        return h, c

    zeros = jnp.zeros((2 * B, H), jnp.float32)
    lax.fori_loop(0, T, step, (zeros, zeros), unroll=True)


# ------------------------------ JAX wrapper ----------------------------------

@functools.partial(jax.jit, static_argnames=("hidden_dim",))
def sentence_rnn_forward(token_embeddings, sentence_lengths, params, *, hidden_dim):
    """Bidirectional single-layer LSTM with packed-sequence masking.

    token_embeddings: (B, T, E) float32
    sentence_lengths: (B,) int32
    returns: (B, T, 2*hidden_dim) float32 (zeros at padded positions)
    """
    B, T, E = token_embeddings.shape
    H = hidden_dim

    # torch.clamp(sentence_lengths, min=1)
    lens = jnp.maximum(sentence_lengths.astype(jnp.int32), 1)                 # (B,)
    x = jnp.transpose(token_embeddings.astype(jnp.float32), (1, 0, 2))        # (T, B, E)

    # Fused per-direction weights: [W_ih; W_hh] -> (E+H, 4H).
    wf = jnp.concatenate([params["wih_f"], params["whh_f"]], axis=0)
    wb = jnp.concatenate([params["wih_b"], params["whh_b"]], axis=0)
    # Stacked per-row bias: rows 0:B forward, rows B:2B backward -> (2B, 4H).
    bias = jnp.concatenate([jnp.tile(params["b_f"], (B, 1)),
                            jnp.tile(params["b_b"], (B, 1))], axis=0)

    # Valid-step window per stacked row: fwd rows update for s in [0, len),
    # bwd rows (which process time T-1-s at step s) update for s in [T-len, T).
    lo = jnp.concatenate([jnp.zeros((B,), jnp.int32), (T - lens).astype(jnp.int32)])
    hi = jnp.concatenate([lens, jnp.full((B,), T, jnp.int32)])
    lohi = jnp.stack([lo, hi], axis=1).astype(jnp.int32)                      # (2B, 2)

    out = pl.pallas_call(
        _bilstm_kernel,
        out_shape=jax.ShapeDtypeStruct((T, 2 * B, H), jnp.float32),
        grid=(1,),
        in_specs=[
            pl.BlockSpec((T, B, E), lambda i: (0, 0, 0)),        # x, passed once
            pl.BlockSpec((2 * B, 2), lambda i: (0, 0)),          # [lo, hi) windows
            pl.BlockSpec((E + H, 4 * H), lambda i: (0, 0)),      # fused fwd weights
            pl.BlockSpec((E + H, 4 * H), lambda i: (0, 0)),      # fused bwd weights
            pl.BlockSpec((2 * B, 4 * H), lambda i: (0, 0)),      # stacked bias
        ],
        out_specs=pl.BlockSpec((T, 2 * B, H), lambda i: (0, 0, 0)),
        compiler_params=pltpu.CompilerParams(
            dimension_semantics=("arbitrary",)),                 # single step, recurrent
    )(x, lohi, wf, wb, bias)

    out_f = out[:, :B, :]                       # (T, B, H) forward, time-ordered
    out_b = out[:, B:, :][::-1]                 # backward written in step order -> reverse
    res = jnp.concatenate([out_f, out_b], axis=-1)       # (T, B, 2H)
    return jnp.transpose(res, (1, 0, 2))                 # (B, T, 2H)


# --------------------------- pure-JAX reference -------------------------------

def _lstm_ref_dir(x, lens, wih, whh, b, reverse):
    T, B, _ = x.shape
    H = whh.shape[0]

    def step(carry, t):
        h, c = carry
        x_t = x[t]
        gates = x_t @ wih + h @ whh + b
        i = jax.nn.sigmoid(gates[:, :H])
        f = jax.nn.sigmoid(gates[:, H:2 * H])
        g = jnp.tanh(gates[:, 2 * H:3 * H])
        o = jax.nn.sigmoid(gates[:, 3 * H:])
        c_new = f * c + i * g
        h_new = o * jnp.tanh(c_new)
        mask = (t < lens)[:, None]
        h = jnp.where(mask, h_new, h)
        c = jnp.where(mask, c_new, c)
        return (h, c), jnp.where(mask, h_new, 0.0)

    ts = jnp.arange(T)[::-1] if reverse else jnp.arange(T)
    init = (jnp.zeros((B, H), jnp.float32), jnp.zeros((B, H), jnp.float32))
    _, outs = lax.scan(step, init, ts)
    return outs[::-1] if reverse else outs


def sentence_rnn_reference(token_embeddings, sentence_lengths, params, hidden_dim):
    lens = jnp.maximum(sentence_lengths.astype(jnp.int32), 1)
    x = jnp.transpose(token_embeddings.astype(jnp.float32), (1, 0, 2))
    out_f = _lstm_ref_dir(x, lens, params["wih_f"], params["whh_f"],
                          params["b_f"][0], reverse=False)
    out_b = _lstm_ref_dir(x, lens, params["wih_b"], params["whh_b"],
                          params["b_b"][0], reverse=True)
    return jnp.transpose(jnp.concatenate([out_f, out_b], axis=-1), (1, 0, 2))


# ----------------------------------- main -------------------------------------

if __name__ == "__main__":
    # Small shapes consistent with the module's forward.
    B, T, E, H = 4, 8, 16, 32      # word_embedding_dimension=16, hidden_dim=32, bidirectional

    key = jax.random.PRNGKey(0)
    k_x, k_wf1, k_wf2, k_bf, k_wb1, k_wb2, k_bb = jax.random.split(key, 7)

    token_embeddings = jax.random.normal(k_x, (B, T, E), dtype=jnp.float32)
    sentence_lengths = jnp.array([8, 5, 3, 0], dtype=jnp.int32)   # clamped to min 1 inside

    scale = 1.0 / jnp.sqrt(jnp.float32(H))                        # PyTorch LSTM init range
    uni = lambda k, shp: jax.random.uniform(k, shp, jnp.float32, -scale, scale)
    params = {
        "wih_f": uni(k_wf1, (E, 4 * H)),
        "whh_f": uni(k_wf2, (H, 4 * H)),
        "b_f":   uni(k_bf,  (1, 4 * H)),   # combined b_ih + b_hh
        "wih_b": uni(k_wb1, (E, 4 * H)),
        "whh_b": uni(k_wb2, (H, 4 * H)),
        "b_b":   uni(k_bb,  (1, 4 * H)),
    }

    features = {"token_embeddings": token_embeddings,
                "sentence_lengths": sentence_lengths}

    out = sentence_rnn_forward(features["token_embeddings"],
                               features["sentence_lengths"],
                               params, hidden_dim=H)
    out = jax.block_until_ready(out)

    # pad_packed_sequence pads only up to max(sentence_lengths)
    max_len = int(jnp.max(jnp.maximum(sentence_lengths, 1)))
    features["token_embeddings"] = out[:, :max_len, :]

    ref = sentence_rnn_reference(token_embeddings, sentence_lengths, params, H)
    assert features["token_embeddings"].shape == (B, max_len, 2 * H)
    assert jnp.allclose(out, ref, atol=1e-4, rtol=1e-4), "Pallas output != reference"

    print("KERNEL_OK")
</pallas_src>

<mosaic_0001>
module attributes {stable_mosaic.version = 11 : i64} {
  func.func @_bilstm_kernel(%arg0: i32, %arg1: memref<8x4x16xf32, #tpu.memory_space<vmem>>, %arg2: memref<8x2xi32, #tpu.memory_space<vmem>>, %arg3: memref<48x128xf32, #tpu.memory_space<vmem>>, %arg4: memref<48x128xf32, #tpu.memory_space<vmem>>, %arg5: memref<8x128xf32, #tpu.memory_space<vmem>>, %arg6: memref<8x8x32xf32, #tpu.memory_space<vmem>>) attributes {dimension_semantics = [#tpu.dimension_semantics<arbitrary>], iteration_bounds = array<i64: 1>, scalar_prefetch = 0 : i64, scratch_operands = 0 : i64, tpu.core_type = #tpu.core_type<tc>, window_params = [{pipeline_mode = #tpu.pipeline_mode<synchronous>, transform_indices = @transform_0, window_bounds = array<i64: 8, 4, 16>}, {pipeline_mode = #tpu.pipeline_mode<synchronous>, transform_indices = @transform_1, window_bounds = array<i64: 8, 2>}, {pipeline_mode = #tpu.pipeline_mode<synchronous>, transform_indices = @transform_2, window_bounds = array<i64: 48, 128>}, {pipeline_mode = #tpu.pipeline_mode<synchronous>, transform_indices = @transform_3, window_bounds = array<i64: 48, 128>}, {pipeline_mode = #tpu.pipeline_mode<synchronous>, transform_indices = @transform_4, window_bounds = array<i64: 8, 128>}, {pipeline_mode = #tpu.pipeline_mode<synchronous>, transform_indices = @transform_5, window_bounds = array<i64: 8, 8, 32>}]} {
    %c0 = arith.constant 0 : index
    %c0_0 = arith.constant 0 : index
    %0 = vector.load %arg2[%c0, %c0_0] : memref<8x2xi32, #tpu.memory_space<vmem>>, vector<8x2xi32>
    %1 = vector.extract_strided_slice %0 {offsets = [0, 0], sizes = [8, 1], strides = [1, 1]} : vector<8x2xi32> to vector<8x1xi32>
    %2 = vector.extract_strided_slice %0 {offsets = [0, 1], sizes = [8, 1], strides = [1, 1]} : vector<8x2xi32> to vector<8x1xi32>
    %c0_1 = arith.constant 0 : index
    %c0_2 = arith.constant 0 : index
    %3 = vector.load %arg3[%c0_1, %c0_2] : memref<48x128xf32, #tpu.memory_space<vmem>>, vector<48x128xf32>
    %c0_3 = arith.constant 0 : index
    %c0_4 = arith.constant 0 : index
    %4 = vector.load %arg4[%c0_3, %c0_4] : memref<48x128xf32, #tpu.memory_space<vmem>>, vector<48x128xf32>
    %c0_5 = arith.constant 0 : index
    %c0_6 = arith.constant 0 : index
    %5 = vector.load %arg5[%c0_5, %c0_6] : memref<8x128xf32, #tpu.memory_space<vmem>>, vector<8x128xf32>
    %cst = arith.constant 0.000000e+00 : f32
    %6 = vector.broadcast %cst : f32 to vector<8x32xf32>
    %c0_i32 = arith.constant 0 : i32
    %7 = arith.index_cast %c0_i32 : i32 to index
    %c0_7 = arith.constant 0 : index
    %c0_8 = arith.constant 0 : index
    %8 = vector.load %arg1[%7, %c0_7, %c0_8] : memref<8x4x16xf32, #tpu.memory_space<vmem>>, vector<1x4x16xf32>
    %9 = vector.shape_cast %8 : vector<1x4x16xf32> to vector<4x16xf32>
    %c7_i32 = arith.constant 7 : i32
    %10 = arith.subi %c7_i32, %c0_i32 : i32
    %11 = arith.index_cast %10 : i32 to index
    %c0_9 = arith.constant 0 : index
    %c0_10 = arith.constant 0 : index
    %12 = vector.load %arg1[%11, %c0_9, %c0_10] : memref<8x4x16xf32, #tpu.memory_space<vmem>>, vector<1x4x16xf32>
    %13 = vector.shape_cast %12 : vector<1x4x16xf32> to vector<4x16xf32>
    %14 = vector.extract_strided_slice %6 {offsets = [0, 0], sizes = [4, 32], strides = [1, 1]} : vector<8x32xf32> to vector<4x32xf32>
    %15 = tpu.concatenate %9, %14 in 1 : vector<4x16xf32>, vector<4x32xf32> -> vector<4x48xf32>
    %cst_11 = arith.constant dense<0.000000e+00> : vector<4x128xf32>
    %16 = tpu.matmul %15, %3, %cst_11 {dimension_numbers = #tpu.dot_dimension_numbers<[1], [0], [0], [1], [0, 0, 1, 1], [], []>} : vector<4x48xf32>, vector<48x128xf32>, vector<4x128xf32> -> vector<4x128xf32>
    %17 = vector.extract_strided_slice %6 {offsets = [4, 0], sizes = [4, 32], strides = [1, 1]} : vector<8x32xf32> to vector<4x32xf32>
    %18 = tpu.concatenate %13, %17 in 1 : vector<4x16xf32>, vector<4x32xf32> -> vector<4x48xf32>
    %cst_12 = arith.constant dense<0.000000e+00> : vector<4x128xf32>
    %19 = tpu.matmul %18, %4, %cst_12 {dimension_numbers = #tpu.dot_dimension_numbers<[1], [0], [0], [1], [0, 0, 1, 1], [], []>} : vector<4x48xf32>, vector<48x128xf32>, vector<4x128xf32> -> vector<4x128xf32>
    %20 = tpu.concatenate %16, %19 in 0 : vector<4x128xf32>, vector<4x128xf32> -> vector<8x128xf32>
    %21 = arith.addf %20, %5 : vector<8x128xf32>
    %22 = vector.extract_strided_slice %21 {offsets = [0, 0], sizes = [8, 32], strides = [1, 1]} : vector<8x128xf32> to vector<8x32xf32>
    %23 = arith.negf %22 : vector<8x32xf32>
    %24 = math.exp %23 : vector<8x32xf32>
    %cst_13 = arith.constant 1.000000e+00 : f32
    %25 = vector.broadcast %cst_13 : f32 to vector<8x32xf32>
    %26 = arith.addf %25, %24 : vector<8x32xf32>
    %27 = arith.divf %25, %26 : vector<8x32xf32>
    %28 = vector.extract_strided_slice %21 {offsets = [0, 32], sizes = [8, 32], strides = [1, 1]} : vector<8x128xf32> to vector<8x32xf32>
    %29 = arith.negf %28 : vector<8x32xf32>
    %30 = math.exp %29 : vector<8x32xf32>
    %cst_14 = arith.constant 1.000000e+00 : f32
    %31 = vector.broadcast %cst_14 : f32 to vector<8x32xf32>
    %32 = arith.addf %31, %30 : vector<8x32xf32>
    %33 = arith.divf %31, %32 : vector<8x32xf32>
    %34 = vector.extract_strided_slice %21 {offsets = [0, 64], sizes = [8, 32], strides = [1, 1]} : vector<8x128xf32> to vector<8x32xf32>
    %35 = math.tanh %34 : vector<8x32xf32>
    %36 = vector.extract_strided_slice %21 {offsets = [0, 96], sizes = [8, 32], strides = [1, 1]} : vector<8x128xf32> to vector<8x32xf32>
    %37 = arith.negf %36 : vector<8x32xf32>
    %38 = math.exp %37 : vector<8x32xf32>
    %cst_15 = arith.constant 1.000000e+00 : f32
    %39 = vector.broadcast %cst_15 : f32 to vector<8x32xf32>
    %40 = arith.addf %39, %38 : vector<8x32xf32>
    %41 = arith.divf %39, %40 : vector<8x32xf32>
    %42 = arith.mulf %33, %6 : vector<8x32xf32>
    %43 = arith.mulf %27, %35 : vector<8x32xf32>
    %44 = arith.addf %42, %43 : vector<8x32xf32>
    %45 = math.tanh %44 : vector<8x32xf32>
    %46 = arith.mulf %41, %45 : vector<8x32xf32>
    %47 = vector.broadcast %c0_i32 : i32 to vector<8x1xi32>
    %48 = arith.cmpi sge, %47, %1 : vector<8x1xi32>
    %49 = vector.broadcast %c0_i32 : i32 to vector<8x1xi32>
    %50 = arith.cmpi slt, %49, %2 : vector<8x1xi32>
    %51 = arith.andi %48, %50 : vector<8x1xi1>
    %52 = vector.shape_cast %51 : vector<8x1xi1> to vector<8x1xi1>
    %53 = vector.broadcast %52 : vector<8x1xi1> to vector<8x32xi1>
    %54 = arith.select %53, %46, %6 : vector<8x32xi1>, vector<8x32xf32>
    %55 = vector.shape_cast %51 : vector<8x1xi1> to vector<8x1xi1>
    %56 = vector.broadcast %55 : vector<8x1xi1> to vector<8x32xi1>
    %57 = arith.select %56, %44, %6 : vector<8x32xi1>, vector<8x32xf32>
    %cst_16 = arith.constant 0.000000e+00 : f32
    %58 = vector.shape_cast %51 : vector<8x1xi1> to vector<8x1xi1>
    %59 = vector.broadcast %58 : vector<8x1xi1> to vector<8x32xi1>
    %60 = vector.broadcast %cst_16 : f32 to vector<8x32xf32>
    %61 = arith.select %59, %46, %60 : vector<8x32xi1>, vector<8x32xf32>
    %62 = arith.index_cast %c0_i32 : i32 to index
    %c0_17 = arith.constant 0 : index
    %c0_18 = arith.constant 0 : index
    %63 = vector.load %arg6[%62, %c0_17, %c0_18] : memref<8x8x32xf32, #tpu.memory_space<vmem>>, vector<1x8x32xf32>
    %64 = vector.shape_cast %63 : vector<1x8x32xf32> to vector<8x32xf32>
    %65 = vector.shape_cast %61 : vector<8x32xf32> to vector<1x8x32xf32>
    tpu.vector_store %arg6[%62, %c0_17, %c0_18], %65 {strides = array<i32>} : memref<8x8x32xf32, #tpu.memory_space<vmem>>, vector<1x8x32xf32>,
    %c1_i32 = arith.constant 1 : i32
    %66 = arith.index_cast %c1_i32 : i32 to index
    %c0_19 = arith.constant 0 : index
    %c0_20 = arith.constant 0 : index
    %67 = vector.load %arg1[%66, %c0_19, %c0_20] : memref<8x4x16xf32, #tpu.memory_space<vmem>>, vector<1x4x16xf32>
    %68 = vector.shape_cast %67 : vector<1x4x16xf32> to vector<4x16xf32>
    %c7_i32_21 = arith.constant 7 : i32
    %69 = arith.subi %c7_i32_21, %c1_i32 : i32
    %70 = arith.index_cast %69 : i32 to index
    %c0_22 = arith.constant 0 : index
    %c0_23 = arith.constant 0 : index
    %71 = vector.load %arg1[%70, %c0_22, %c0_23] : memref<8x4x16xf32, #tpu.memory_space<vmem>>, vector<1x4x16xf32>
    %72 = vector.shape_cast %71 : vector<1x4x16xf32> to vector<4x16xf32>
    %73 = vector.extract_strided_slice %54 {offsets = [0, 0], sizes = [4, 32], strides = [1, 1]} : vector<8x32xf32> to vector<4x32xf32>
    %74 = tpu.concatenate %68, %73 in 1 : vector<4x16xf32>, vector<4x32xf32> -> vector<4x48xf32>
    %cst_24 = arith.constant dense<0.000000e+00> : vector<4x128xf32>
    %75 = tpu.matmul %74, %3, %cst_24 {dimension_numbers = #tpu.dot_dimension_numbers<[1], [0], [0], [1], [0, 0, 1, 1], [], []>} : vector<4x48xf32>, vector<48x128xf32>, vector<4x128xf32> -> vector<4x128xf32>
    %76 = vector.extract_strided_slice %54 {offsets = [4, 0], sizes = [4, 32], strides = [1, 1]} : vector<8x32xf32> to vector<4x32xf32>
    %77 = tpu.concatenate %72, %76 in 1 : vector<4x16xf32>, vector<4x32xf32> -> vector<4x48xf32>
    %cst_25 = arith.constant dense<0.000000e+00> : vector<4x128xf32>
    %78 = tpu.matmul %77, %4, %cst_25 {dimension_numbers = #tpu.dot_dimension_numbers<[1], [0], [0], [1], [0, 0, 1, 1], [], []>} : vector<4x48xf32>, vector<48x128xf32>, vector<4x128xf32> -> vector<4x128xf32>
    %79 = tpu.concatenate %75, %78 in 0 : vector<4x128xf32>, vector<4x128xf32> -> vector<8x128xf32>
    %80 = arith.addf %79, %5 : vector<8x128xf32>
    %81 = vector.extract_strided_slice %80 {offsets = [0, 0], sizes = [8, 32], strides = [1, 1]} : vector<8x128xf32> to vector<8x32xf32>
    %82 = arith.negf %81 : vector<8x32xf32>
    %83 = math.exp %82 : vector<8x32xf32>
    %cst_26 = arith.constant 1.000000e+00 : f32
    %84 = vector.broadcast %cst_26 : f32 to vector<8x32xf32>
    %85 = arith.addf %84, %83 : vector<8x32xf32>
    %86 = arith.divf %84, %85 : vector<8x32xf32>
    %87 = vector.extract_strided_slice %80 {offsets = [0, 32], sizes = [8, 32], strides = [1, 1]} : vector<8x128xf32> to vector<8x32xf32>
    %88 = arith.negf %87 : vector<8x32xf32>
    %89 = math.exp %88 : vector<8x32xf32>
    %cst_27 = arith.constant 1.000000e+00 : f32
    %90 = vector.broadcast %cst_27 : f32 to vector<8x32xf32>
    %91 = arith.addf %90, %89 : vector<8x32xf32>
    %92 = arith.divf %90, %91 : vector<8x32xf32>
    %93 = vector.extract_strided_slice %80 {offsets = [0, 64], sizes = [8, 32], strides = [1, 1]} : vector<8x128xf32> to vector<8x32xf32>
    %94 = math.tanh %93 : vector<8x32xf32>
    %95 = vector.extract_strided_slice %80 {offsets = [0, 96], sizes = [8, 32], strides = [1, 1]} : vector<8x128xf32> to vector<8x32xf32>
    %96 = arith.negf %95 : vector<8x32xf32>
    %97 = math.exp %96 : vector<8x32xf32>
    %cst_28 = arith.constant 1.000000e+00 : f32
    %98 = vector.broadcast %cst_28 : f32 to vector<8x32xf32>
    %99 = arith.addf %98, %97 : vector<8x32xf32>
    %100 = arith.divf %98, %99 : vector<8x32xf32>
    %101 = arith.mulf %92, %57 : vector<8x32xf32>
    %102 = arith.mulf %86, %94 : vector<8x32xf32>
    %103 = arith.addf %101, %102 : vector<8x32xf32>
    %104 = math.tanh %103 : vector<8x32xf32>
    %105 = arith.mulf %100, %104 : vector<8x32xf32>
    %106 = vector.broadcast %c1_i32 : i32 to vector<8x1xi32>
    %107 = arith.cmpi sge, %106, %1 : vector<8x1xi32>
    %108 = vector.broadcast %c1_i32 : i32 to vector<8x1xi32>
    %109 = arith.cmpi slt, %108, %2 : vector<8x1xi32>
    %110 = arith.andi %107, %109 : vector<8x1xi1>
    %111 = vector.shape_cast %110 : vector<8x1xi1> to vector<8x1xi1>
    %112 = vector.broadcast %111 : vector<8x1xi1> to vector<8x32xi1>
    %113 = arith.select %112, %105, %54 : vector<8x32xi1>, vector<8x32xf32>
    %114 = vector.shape_cast %110 : vector<8x1xi1> to vector<8x1xi1>
    %115 = vector.broadcast %114 : vector<8x1xi1> to vector<8x32xi1>
    %116 = arith.select %115, %103, %57 : vector<8x32xi1>, vector<8x32xf32>
    %cst_29 = arith.constant 0.000000e+00 : f32
    %117 = vector.shape_cast %110 : vector<8x1xi1> to vector<8x1xi1>
    %118 = vector.broadcast %117 : vector<8x1xi1> to vector<8x32xi1>
    %119 = vector.broadcast %cst_29 : f32 to vector<8x32xf32>
    %120 = arith.select %118, %105, %119 : vector<8x32xi1>, vector<8x32xf32>
    %121 = arith.index_cast %c1_i32 : i32 to index
    %c0_30 = arith.constant 0 : index
    %c0_31 = arith.constant 0 : index
    %122 = vector.load %arg6[%121, %c0_30, %c0_31] : memref<8x8x32xf32, #tpu.memory_space<vmem>>, vector<1x8x32xf32>
    %123 = vector.shape_cast %122 : vector<1x8x32xf32> to vector<8x32xf32>
    %124 = vector.shape_cast %120 : vector<8x32xf32> to vector<1x8x32xf32>
    tpu.vector_store %arg6[%121, %c0_30, %c0_31], %124 {strides = array<i32>} : memref<8x8x32xf32, #tpu.memory_space<vmem>>, vector<1x8x32xf32>,
    %c2_i32 = arith.constant 2 : i32
    %125 = arith.index_cast %c2_i32 : i32 to index
    %c0_32 = arith.constant 0 : index
    %c0_33 = arith.constant 0 : index
    %126 = vector.load %arg1[%125, %c0_32, %c0_33] : memref<8x4x16xf32, #tpu.memory_space<vmem>>, vector<1x4x16xf32>
    %127 = vector.shape_cast %126 : vector<1x4x16xf32> to vector<4x16xf32>
    %c7_i32_34 = arith.constant 7 : i32
    %128 = arith.subi %c7_i32_34, %c2_i32 : i32
    %129 = arith.index_cast %128 : i32 to index
    %c0_35 = arith.constant 0 : index
    %c0_36 = arith.constant 0 : index
    %130 = vector.load %arg1[%129, %c0_35, %c0_36] : memref<8x4x16xf32, #tpu.memory_space<vmem>>, vector<1x4x16xf32>
    %131 = vector.shape_cast %130 : vector<1x4x16xf32> to vector<4x16xf32>
    %132 = vector.extract_strided_slice %113 {offsets = [0, 0], sizes = [4, 32], strides = [1, 1]} : vector<8x32xf32> to vector<4x32xf32>
    %133 = tpu.concatenate %127, %132 in 1 : vector<4x16xf32>, vector<4x32xf32> -> vector<4x48xf32>
    %cst_37 = arith.constant dense<0.000000e+00> : vector<4x128xf32>
    %134 = tpu.matmul %133, %3, %cst_37 {dimension_numbers = #tpu.dot_dimension_numbers<[1], [0], [0], [1], [0, 0, 1, 1], [], []>} : vector<4x48xf32>, vector<48x128xf32>, vector<4x128xf32> -> vector<4x128xf32>
    %135 = vector.extract_strided_slice %113 {offsets = [4, 0], sizes = [4, 32], strides = [1, 1]} : vector<8x32xf32> to vector<4x32xf32>
    %136 = tpu.concatenate %131, %135 in 1 : vector<4x16xf32>, vector<4x32xf32> -> vector<4x48xf32>
    %cst_38 = arith.constant dense<0.000000e+00> : vector<4x128xf32>
    %137 = tpu.matmul %136, %4, %cst_38 {dimension_numbers = #tpu.dot_dimension_numbers<[1], [0], [0], [1], [0, 0, 1, 1], [], []>} : vector<4x48xf32>, vector<48x128xf32>, vector<4x128xf32> -> vector<4x128xf32>
    %138 = tpu.concatenate %134, %137 in 0 : vector<4x128xf32>, vector<4x128xf32> -> vector<8x128xf32>
    %139 = arith.addf %138, %5 : vector<8x128xf32>
    %140 = vector.extract_strided_slice %139 {offsets = [0, 0], sizes = [8, 32], strides = [1, 1]} : vector<8x128xf32> to vector<8x32xf32>
    %141 = arith.negf %140 : vector<8x32xf32>
    %142 = math.exp %141 : vector<8x32xf32>
    %cst_39 = arith.constant 1.000000e+00 : f32
    %143 = vector.broadcast %cst_39 : f32 to vector<8x32xf32>
    %144 = arith.addf %143, %142 : vector<8x32xf32>
    %145 = arith.divf %143, %144 : vector<8x32xf32>
    %146 = vector.extract_strided_slice %139 {offsets = [0, 32], sizes = [8, 32], strides = [1, 1]} : vector<8x128xf32> to vector<8x32xf32>
    %147 = arith.negf %146 : vector<8x32xf32>
    %148 = math.exp %147 : vector<8x32xf32>
    %cst_40 = arith.constant 1.000000e+00 : f32
    %149 = vector.broadcast %cst_40 : f32 to vector<8x32xf32>
    %150 = arith.addf %149, %148 : vector<8x32xf32>
    %151 = arith.divf %149, %150 : vector<8x32xf32>
    %152 = vector.extract_strided_slice %139 {offsets = [0, 64], sizes = [8, 32], strides = [1, 1]} : vector<8x128xf32> to vector<8x32xf32>
    %153 = math.tanh %152 : vector<8x32xf32>
    %154 = vector.extract_strided_slice %139 {offsets = [0, 96], sizes = [8, 32], strides = [1, 1]} : vector<8x128xf32> to vector<8x32xf32>
    %155 = arith.negf %154 : vector<8x32xf32>
    %156 = math.exp %155 : vector<8x32xf32>
    %cst_41 = arith.constant 1.000000e+00 : f32
    %157 = vector.broadcast %cst_41 : f32 to vector<8x32xf32>
    %158 = arith.addf %157, %156 : vector<8x32xf32>
    %159 = arith.divf %157, %158 : vector<8x32xf32>
    %160 = arith.mulf %151, %116 : vector<8x32xf32>
    %161 = arith.mulf %145, %153 : vector<8x32xf32>
    %162 = arith.addf %160, %161 : vector<8x32xf32>
    %163 = math.tanh %162 : vector<8x32xf32>
    %164 = arith.mulf %159, %163 : vector<8x32xf32>
    %165 = vector.broadcast %c2_i32 : i32 to vector<8x1xi32>
    %166 = arith.cmpi sge, %165, %1 : vector<8x1xi32>
    %167 = vector.broadcast %c2_i32 : i32 to vector<8x1xi32>
    %168 = arith.cmpi slt, %167, %2 : vector<8x1xi32>
    %169 = arith.andi %166, %168 : vector<8x1xi1>
    %170 = vector.shape_cast %169 : vector<8x1xi1> to vector<8x1xi1>
    %171 = vector.broadcast %170 : vector<8x1xi1> to vector<8x32xi1>
    %172 = arith.select %171, %164, %113 : vector<8x32xi1>, vector<8x32xf32>
    %173 = vector.shape_cast %169 : vector<8x1xi1> to vector<8x1xi1>
    %174 = vector.broadcast %173 : vector<8x1xi1> to vector<8x32xi1>
    %175 = arith.select %174, %162, %116 : vector<8x32xi1>, vector<8x32xf32>
    %cst_42 = arith.constant 0.000000e+00 : f32
    %176 = vector.shape_cast %169 : vector<8x1xi1> to vector<8x1xi1>
    %177 = vector.broadcast %176 : vector<8x1xi1> to vector<8x32xi1>
    %178 = vector.broadcast %cst_42 : f32 to vector<8x32xf32>
    %179 = arith.select %177, %164, %178 : vector<8x32xi1>, vector<8x32xf32>
    %180 = arith.index_cast %c2_i32 : i32 to index
    %c0_43 = arith.constant 0 : index
    %c0_44 = arith.constant 0 : index
    %181 = vector.load %arg6[%180, %c0_43, %c0_44] : memref<8x8x32xf32, #tpu.memory_space<vmem>>, vector<1x8x32xf32>
    %182 = vector.shape_cast %181 : vector<1x8x32xf32> to vector<8x32xf32>
    %183 = vector.shape_cast %179 : vector<8x32xf32> to vector<1x8x32xf32>
    tpu.vector_store %arg6[%180, %c0_43, %c0_44], %183 {strides = array<i32>} : memref<8x8x32xf32, #tpu.memory_space<vmem>>, vector<1x8x32xf32>,
    %c3_i32 = arith.constant 3 : i32
    %184 = arith.index_cast %c3_i32 : i32 to index
    %c0_45 = arith.constant 0 : index
    %c0_46 = arith.constant 0 : index
    %185 = vector.load %arg1[%184, %c0_45, %c0_46] : memref<8x4x16xf32, #tpu.memory_space<vmem>>, vector<1x4x16xf32>
    %186 = vector.shape_cast %185 : vector<1x4x16xf32> to vector<4x16xf32>
    %c7_i32_47 = arith.constant 7 : i32
    %187 = arith.subi %c7_i32_47, %c3_i32 : i32
    %188 = arith.index_cast %187 : i32 to index
    %c0_48 = arith.constant 0 : index
    %c0_49 = arith.constant 0 : index
    %189 = vector.load %arg1[%188, %c0_48, %c0_49] : memref<8x4x16xf32, #tpu.memory_space<vmem>>, vector<1x4x16xf32>
    %190 = vector.shape_cast %189 : vector<1x4x16xf32> to vector<4x16xf32>
    %191 = vector.extract_strided_slice %172 {offsets = [0, 0], sizes = [4, 32], strides = [1, 1]} : vector<8x32xf32> to vector<4x32xf32>
    %192 = tpu.concatenate %186, %191 in 1 : vector<4x16xf32>, vector<4x32xf32> -> vector<4x48xf32>
    %cst_50 = arith.constant dense<0.000000e+00> : vector<4x128xf32>
    %193 = tpu.matmul %192, %3, %cst_50 {dimension_numbers = #tpu.dot_dimension_numbers<[1], [0], [0], [1], [0, 0, 1, 1], [], []>} : vector<4x48xf32>, vector<48x128xf32>, vector<4x128xf32> -> vector<4x128xf32>
    %194 = vector.extract_strided_slice %172 {offsets = [4, 0], sizes = [4, 32], strides = [1, 1]} : vector<8x32xf32> to vector<4x32xf32>
    %195 = tpu.concatenate %190, %194 in 1 : vector<4x16xf32>, vector<4x32xf32> -> vector<4x48xf32>
    %cst_51 = arith.constant dense<0.000000e+00> : vector<4x128xf32>
    %196 = tpu.matmul %195, %4, %cst_51 {dimension_numbers = #tpu.dot_dimension_numbers<[1], [0], [0], [1], [0, 0, 1, 1], [], []>} : vector<4x48xf32>, vector<48x128xf32>, vector<4x128xf32> -> vector<4x128xf32>
    %197 = tpu.concatenate %193, %196 in 0 : vector<4x128xf32>, vector<4x128xf32> -> vector<8x128xf32>
    %198 = arith.addf %197, %5 : vector<8x128xf32>
    %199 = vector.extract_strided_slice %198 {offsets = [0, 0], sizes = [8, 32], strides = [1, 1]} : vector<8x128xf32> to vector<8x32xf32>
    %200 = arith.negf %199 : vector<8x32xf32>
    %201 = math.exp %200 : vector<8x32xf32>
    %cst_52 = arith.constant 1.000000e+00 : f32
    %202 = vector.broadcast %cst_52 : f32 to vector<8x32xf32>
    %203 = arith.addf %202, %201 : vector<8x32xf32>
    %204 = arith.divf %202, %203 : vector<8x32xf32>
    %205 = vector.extract_strided_slice %198 {offsets = [0, 32], sizes = [8, 32], strides = [1, 1]} : vector<8x128xf32> to vector<8x32xf32>
    %206 = arith.negf %205 : vector<8x32xf32>
    %207 = math.exp %206 : vector<8x32xf32>
    %cst_53 = arith.constant 1.000000e+00 : f32
    %208 = vector.broadcast %cst_53 : f32 to vector<8x32xf32>
    %209 = arith.addf %208, %207 : vector<8x32xf32>
    %210 = arith.divf %208, %209 : vector<8x32xf32>
    %211 = vector.extract_strided_slice %198 {offsets = [0, 64], sizes = [8, 32], strides = [1, 1]} : vector<8x128xf32> to vector<8x32xf32>
    %212 = math.tanh %211 : vector<8x32xf32>
    %213 = vector.extract_strided_slice %198 {offsets = [0, 96], sizes = [8, 32], strides = [1, 1]} : vector<8x128xf32> to vector<8x32xf32>
    %214 = arith.negf %213 : vector<8x32xf32>
    %215 = math.exp %214 : vector<8x32xf32>
    %cst_54 = arith.constant 1.000000e+00 : f32
    %216 = vector.broadcast %cst_54 : f32 to vector<8x32xf32>
    %217 = arith.addf %216, %215 : vector<8x32xf32>
    %218 = arith.divf %216, %217 : vector<8x32xf32>
    %219 = arith.mulf %210, %175 : vector<8x32xf32>
    %220 = arith.mulf %204, %212 : vector<8x32xf32>
    %221 = arith.addf %219, %220 : vector<8x32xf32>
    %222 = math.tanh %221 : vector<8x32xf32>
    %223 = arith.mulf %218, %222 : vector<8x32xf32>
    %224 = vector.broadcast %c3_i32 : i32 to vector<8x1xi32>
    %225 = arith.cmpi sge, %224, %1 : vector<8x1xi32>
    %226 = vector.broadcast %c3_i32 : i32 to vector<8x1xi32>
    %227 = arith.cmpi slt, %226, %2 : vector<8x1xi32>
    %228 = arith.andi %225, %227 : vector<8x1xi1>
    %229 = vector.shape_cast %228 : vector<8x1xi1> to vector<8x1xi1>
    %230 = vector.broadcast %229 : vector<8x1xi1> to vector<8x32xi1>
    %231 = arith.select %230, %223, %172 : vector<8x32xi1>, vector<8x32xf32>
    %232 = vector.shape_cast %228 : vector<8x1xi1> to vector<8x1xi1>
    %233 = vector.broadcast %232 : vector<8x1xi1> to vector<8x32xi1>
    %234 = arith.select %233, %221, %175 : vector<8x32xi1>, vector<8x32xf32>
    %cst_55 = arith.constant 0.000000e+00 : f32
    %235 = vector.shape_cast %228 : vector<8x1xi1> to vector<8x1xi1>
    %236 = vector.broadcast %235 : vector<8x1xi1> to vector<8x32xi1>
    %237 = vector.broadcast %cst_55 : f32 to vector<8x32xf32>
    %238 = arith.select %236, %223, %237 : vector<8x32xi1>, vector<8x32xf32>
    %239 = arith.index_cast %c3_i32 : i32 to index
    %c0_56 = arith.constant 0 : index
    %c0_57 = arith.constant 0 : index
    %240 = vector.load %arg6[%239, %c0_56, %c0_57] : memref<8x8x32xf32, #tpu.memory_space<vmem>>, vector<1x8x32xf32>
    %241 = vector.shape_cast %240 : vector<1x8x32xf32> to vector<8x32xf32>
    %242 = vector.shape_cast %238 : vector<8x32xf32> to vector<1x8x32xf32>
    tpu.vector_store %arg6[%239, %c0_56, %c0_57], %242 {strides = array<i32>} : memref<8x8x32xf32, #tpu.memory_space<vmem>>, vector<1x8x32xf32>,
    %c4_i32 = arith.constant 4 : i32
    %243 = arith.index_cast %c4_i32 : i32 to index
    %c0_58 = arith.constant 0 : index
    %c0_59 = arith.constant 0 : index
    %244 = vector.load %arg1[%243, %c0_58, %c0_59] : memref<8x4x16xf32, #tpu.memory_space<vmem>>, vector<1x4x16xf32>
    %245 = vector.shape_cast %244 : vector<1x4x16xf32> to vector<4x16xf32>
    %c7_i32_60 = arith.constant 7 : i32
    %246 = arith.subi %c7_i32_60, %c4_i32 : i32
    %247 = arith.index_cast %246 : i32 to index
    %c0_61 = arith.constant 0 : index
    %c0_62 = arith.constant 0 : index
    %248 = vector.load %arg1[%247, %c0_61, %c0_62] : memref<8x4x16xf32, #tpu.memory_space<vmem>>, vector<1x4x16xf32>
    %249 = vector.shape_cast %248 : vector<1x4x16xf32> to vector<4x16xf32>
    %250 = vector.extract_strided_slice %231 {offsets = [0, 0], sizes = [4, 32], strides = [1, 1]} : vector<8x32xf32> to vector<4x32xf32>
    %251 = tpu.concatenate %245, %250 in 1 : vector<4x16xf32>, vector<4x32xf32> -> vector<4x48xf32>
    %cst_63 = arith.constant dense<0.000000e+00> : vector<4x128xf32>
    %252 = tpu.matmul %251, %3, %cst_63 {dimension_numbers = #tpu.dot_dimension_numbers<[1], [0], [0], [1], [0, 0, 1, 1], [], []>} : vector<4x48xf32>, vector<48x128xf32>, vector<4x128xf32> -> vector<4x128xf32>
    %253 = vector.extract_strided_slice %231 {offsets = [4, 0], sizes = [4, 32], strides = [1, 1]} : vector<8x32xf32> to vector<4x32xf32>
    %254 = tpu.concatenate %249, %253 in 1 : vector<4x16xf32>, vector<4x32xf32> -> vector<4x48xf32>
    %cst_64 = arith.constant dense<0.000000e+00> : vector<4x128xf32>
    %255 = tpu.matmul %254, %4, %cst_64 {dimension_numbers = #tpu.dot_dimension_numbers<[1], [0], [0], [1], [0, 0, 1, 1], [], []>} : vector<4x48xf32>, vector<48x128xf32>, vector<4x128xf32> -> vector<4x128xf32>
    %256 = tpu.concatenate %252, %255 in 0 : vector<4x128xf32>, vector<4x128xf32> -> vector<8x128xf32>
    %257 = arith.addf %256, %5 : vector<8x128xf32>
    %258 = vector.extract_strided_slice %257 {offsets = [0, 0], sizes = [8, 32], strides = [1, 1]} : vector<8x128xf32> to vector<8x32xf32>
    %259 = arith.negf %258 : vector<8x32xf32>
    %260 = math.exp %259 : vector<8x32xf32>
    %cst_65 = arith.constant 1.000000e+00 : f32
    %261 = vector.broadcast %cst_65 : f32 to vector<8x32xf32>
    %262 = arith.addf %261, %260 : vector<8x32xf32>
    %263 = arith.divf %261, %262 : vector<8x32xf32>
    %264 = vector.extract_strided_slice %257 {offsets = [0, 32], sizes = [8, 32], strides = [1, 1]} : vector<8x128xf32> to vector<8x32xf32>
    %265 = arith.negf %264 : vector<8x32xf32>
    %266 = math.exp %265 : vector<8x32xf32>
    %cst_66 = arith.constant 1.000000e+00 : f32
    %267 = vector.broadcast %cst_66 : f32 to vector<8x32xf32>
    %268 = arith.addf %267, %266 : vector<8x32xf32>
    %269 = arith.divf %267, %268 : vector<8x32xf32>
    %270 = vector.extract_strided_slice %257 {offsets = [0, 64], sizes = [8, 32], strides = [1, 1]} : vector<8x128xf32> to vector<8x32xf32>
    %271 = math.tanh %270 : vector<8x32xf32>
    %272 = vector.extract_strided_slice %257 {offsets = [0, 96], sizes = [8, 32], strides = [1, 1]} : vector<8x128xf32> to vector<8x32xf32>
    %273 = arith.negf %272 : vector<8x32xf32>
    %274 = math.exp %273 : vector<8x32xf32>
    %cst_67 = arith.constant 1.000000e+00 : f32
    %275 = vector.broadcast %cst_67 : f32 to vector<8x32xf32>
    %276 = arith.addf %275, %274 : vector<8x32xf32>
    %277 = arith.divf %275, %276 : vector<8x32xf32>
    %278 = arith.mulf %269, %234 : vector<8x32xf32>
    %279 = arith.mulf %263, %271 : vector<8x32xf32>
    %280 = arith.addf %278, %279 : vector<8x32xf32>
    %281 = math.tanh %280 : vector<8x32xf32>
    %282 = arith.mulf %277, %281 : vector<8x32xf32>
    %283 = vector.broadcast %c4_i32 : i32 to vector<8x1xi32>
    %284 = arith.cmpi sge, %283, %1 : vector<8x1xi32>
    %285 = vector.broadcast %c4_i32 : i32 to vector<8x1xi32>
    %286 = arith.cmpi slt, %285, %2 : vector<8x1xi32>
    %287 = arith.andi %284, %286 : vector<8x1xi1>
    %288 = vector.shape_cast %287 : vector<8x1xi1> to vector<8x1xi1>
    %289 = vector.broadcast %288 : vector<8x1xi1> to vector<8x32xi1>
    %290 = arith.select %289, %282, %231 : vector<8x32xi1>, vector<8x32xf32>
    %291 = vector.shape_cast %287 : vector<8x1xi1> to vector<8x1xi1>
    %292 = vector.broadcast %291 : vector<8x1xi1> to vector<8x32xi1>
    %293 = arith.select %292, %280, %234 : vector<8x32xi1>, vector<8x32xf32>
    %cst_68 = arith.constant 0.000000e+00 : f32
    %294 = vector.shape_cast %287 : vector<8x1xi1> to vector<8x1xi1>
    %295 = vector.broadcast %294 : vector<8x1xi1> to vector<8x32xi1>
    %296 = vector.broadcast %cst_68 : f32 to vector<8x32xf32>
    %297 = arith.select %295, %282, %296 : vector<8x32xi1>, vector<8x32xf32>
    %298 = arith.index_cast %c4_i32 : i32 to index
    %c0_69 = arith.constant 0 : index
    %c0_70 = arith.constant 0 : index
    %299 = vector.load %arg6[%298, %c0_69, %c0_70] : memref<8x8x32xf32, #tpu.memory_space<vmem>>, vector<1x8x32xf32>
    %300 = vector.shape_cast %299 : vector<1x8x32xf32> to vector<8x32xf32>
    %301 = vector.shape_cast %297 : vector<8x32xf32> to vector<1x8x32xf32>
    tpu.vector_store %arg6[%298, %c0_69, %c0_70], %301 {strides = array<i32>} : memref<8x8x32xf32, #tpu.memory_space<vmem>>, vector<1x8x32xf32>,
    %c5_i32 = arith.constant 5 : i32
    %302 = arith.index_cast %c5_i32 : i32 to index
    %c0_71 = arith.constant 0 : index
    %c0_72 = arith.constant 0 : index
    %303 = vector.load %arg1[%302, %c0_71, %c0_72] : memref<8x4x16xf32, #tpu.memory_space<vmem>>, vector<1x4x16xf32>
    %304 = vector.shape_cast %303 : vector<1x4x16xf32> to vector<4x16xf32>
    %c7_i32_73 = arith.constant 7 : i32
    %305 = arith.subi %c7_i32_73, %c5_i32 : i32
    %306 = arith.index_cast %305 : i32 to index
    %c0_74 = arith.constant 0 : index
    %c0_75 = arith.constant 0 : index
    %307 = vector.load %arg1[%306, %c0_74, %c0_75] : memref<8x4x16xf32, #tpu.memory_space<vmem>>, vector<1x4x16xf32>
    %308 = vector.shape_cast %307 : vector<1x4x16xf32> to vector<4x16xf32>
    %309 = vector.extract_strided_slice %290 {offsets = [0, 0], sizes = [4, 32], strides = [1, 1]} : vector<8x32xf32> to vector<4x32xf32>
    %310 = tpu.concatenate %304, %309 in 1 : vector<4x16xf32>, vector<4x32xf32> -> vector<4x48xf32>
    %cst_76 = arith.constant dense<0.000000e+00> : vector<4x128xf32>
    %311 = tpu.matmul %310, %3, %cst_76 {dimension_numbers = #tpu.dot_dimension_numbers<[1], [0], [0], [1], [0, 0, 1, 1], [], []>} : vector<4x48xf32>, vector<48x128xf32>, vector<4x128xf32> -> vector<4x128xf32>
    %312 = vector.extract_strided_slice %290 {offsets = [4, 0], sizes = [4, 32], strides = [1, 1]} : vector<8x32xf32> to vector<4x32xf32>
    %313 = tpu.concatenate %308, %312 in 1 : vector<4x16xf32>, vector<4x32xf32> -> vector<4x48xf32>
    %cst_77 = arith.constant dense<0.000000e+00> : vector<4x128xf32>
    %314 = tpu.matmul %313, %4, %cst_77 {dimension_numbers = #tpu.dot_dimension_numbers<[1], [0], [0], [1], [0, 0, 1, 1], [], []>} : vector<4x48xf32>, vector<48x128xf32>, vector<4x128xf32> -> vector<4x128xf32>
    %315 = tpu.concatenate %311, %314 in 0 : vector<4x128xf32>, vector<4x128xf32> -> vector<8x128xf32>
    %316 = arith.addf %315, %5 : vector<8x128xf32>
    %317 = vector.extract_strided_slice %316 {offsets = [0, 0], sizes = [8, 32], strides = [1, 1]} : vector<8x128xf32> to vector<8x32xf32>
    %318 = arith.negf %317 : vector<8x32xf32>
    %319 = math.exp %318 : vector<8x32xf32>
    %cst_78 = arith.constant 1.000000e+00 : f32
    %320 = vector.broadcast %cst_78 : f32 to vector<8x32xf32>
    %321 = arith.addf %320, %319 : vector<8x32xf32>
    %322 = arith.divf %320, %321 : vector<8x32xf32>
    %323 = vector.extract_strided_slice %316 {offsets = [0, 32], sizes = [8, 32], strides = [1, 1]} : vector<8x128xf32> to vector<8x32xf32>
    %324 = arith.negf %323 : vector<8x32xf32>
    %325 = math.exp %324 : vector<8x32xf32>
    %cst_79 = arith.constant 1.000000e+00 : f32
    %326 = vector.broadcast %cst_79 : f32 to vector<8x32xf32>
    %327 = arith.addf %326, %325 : vector<8x32xf32>
    %328 = arith.divf %326, %327 : vector<8x32xf32>
    %329 = vector.extract_strided_slice %316 {offsets = [0, 64], sizes = [8, 32], strides = [1, 1]} : vector<8x128xf32> to vector<8x32xf32>
    %330 = math.tanh %329 : vector<8x32xf32>
    %331 = vector.extract_strided_slice %316 {offsets = [0, 96], sizes = [8, 32], strides = [1, 1]} : vector<8x128xf32> to vector<8x32xf32>
    %332 = arith.negf %331 : vector<8x32xf32>
    %333 = math.exp %332 : vector<8x32xf32>
    %cst_80 = arith.constant 1.000000e+00 : f32
    %334 = vector.broadcast %cst_80 : f32 to vector<8x32xf32>
    %335 = arith.addf %334, %333 : vector<8x32xf32>
    %336 = arith.divf %334, %335 : vector<8x32xf32>
    %337 = arith.mulf %328, %293 : vector<8x32xf32>
    %338 = arith.mulf %322, %330 : vector<8x32xf32>
    %339 = arith.addf %337, %338 : vector<8x32xf32>
    %340 = math.tanh %339 : vector<8x32xf32>
    %341 = arith.mulf %336, %340 : vector<8x32xf32>
    %342 = vector.broadcast %c5_i32 : i32 to vector<8x1xi32>
    %343 = arith.cmpi sge, %342, %1 : vector<8x1xi32>
    %344 = vector.broadcast %c5_i32 : i32 to vector<8x1xi32>
    %345 = arith.cmpi slt, %344, %2 : vector<8x1xi32>
    %346 = arith.andi %343, %345 : vector<8x1xi1>
    %347 = vector.shape_cast %346 : vector<8x1xi1> to vector<8x1xi1>
    %348 = vector.broadcast %347 : vector<8x1xi1> to vector<8x32xi1>
    %349 = arith.select %348, %341, %290 : vector<8x32xi1>, vector<8x32xf32>
    %350 = vector.shape_cast %346 : vector<8x1xi1> to vector<8x1xi1>
    %351 = vector.broadcast %350 : vector<8x1xi1> to vector<8x32xi1>
    %352 = arith.select %351, %339, %293 : vector<8x32xi1>, vector<8x32xf32>
    %cst_81 = arith.constant 0.000000e+00 : f32
    %353 = vector.shape_cast %346 : vector<8x1xi1> to vector<8x1xi1>
    %354 = vector.broadcast %353 : vector<8x1xi1> to vector<8x32xi1>
    %355 = vector.broadcast %cst_81 : f32 to vector<8x32xf32>
    %356 = arith.select %354, %341, %355 : vector<8x32xi1>, vector<8x32xf32>
    %357 = arith.index_cast %c5_i32 : i32 to index
    %c0_82 = arith.constant 0 : index
    %c0_83 = arith.constant 0 : index
    %358 = vector.load %arg6[%357, %c0_82, %c0_83] : memref<8x8x32xf32, #tpu.memory_space<vmem>>, vector<1x8x32xf32>
    %359 = vector.shape_cast %358 : vector<1x8x32xf32> to vector<8x32xf32>
    %360 = vector.shape_cast %356 : vector<8x32xf32> to vector<1x8x32xf32>
    tpu.vector_store %arg6[%357, %c0_82, %c0_83], %360 {strides = array<i32>} : memref<8x8x32xf32, #tpu.memory_space<vmem>>, vector<1x8x32xf32>,
    %c6_i32 = arith.constant 6 : i32
    %361 = arith.index_cast %c6_i32 : i32 to index
    %c0_84 = arith.constant 0 : index
    %c0_85 = arith.constant 0 : index
    %362 = vector.load %arg1[%361, %c0_84, %c0_85] : memref<8x4x16xf32, #tpu.memory_space<vmem>>, vector<1x4x16xf32>
    %363 = vector.shape_cast %362 : vector<1x4x16xf32> to vector<4x16xf32>
    %c7_i32_86 = arith.constant 7 : i32
    %364 = arith.subi %c7_i32_86, %c6_i32 : i32
    %365 = arith.index_cast %364 : i32 to index
    %c0_87 = arith.constant 0 : index
    %c0_88 = arith.constant 0 : index
    %366 = vector.load %arg1[%365, %c0_87, %c0_88] : memref<8x4x16xf32, #tpu.memory_space<vmem>>, vector<1x4x16xf32>
    %367 = vector.shape_cast %366 : vector<1x4x16xf32> to vector<4x16xf32>
    %368 = vector.extract_strided_slice %349 {offsets = [0, 0], sizes = [4, 32], strides = [1, 1]} : vector<8x32xf32> to vector<4x32xf32>
    %369 = tpu.concatenate %363, %368 in 1 : vector<4x16xf32>, vector<4x32xf32> -> vector<4x48xf32>
    %cst_89 = arith.constant dense<0.000000e+00> : vector<4x128xf32>
    %370 = tpu.matmul %369, %3, %cst_89 {dimension_numbers = #tpu.dot_dimension_numbers<[1], [0], [0], [1], [0, 0, 1, 1], [], []>} : vector<4x48xf32>, vector<48x128xf32>, vector<4x128xf32> -> vector<4x128xf32>
    %371 = vector.extract_strided_slice %349 {offsets = [4, 0], sizes = [4, 32], strides = [1, 1]} : vector<8x32xf32> to vector<4x32xf32>
    %372 = tpu.concatenate %367, %371 in 1 : vector<4x16xf32>, vector<4x32xf32> -> vector<4x48xf32>
    %cst_90 = arith.constant dense<0.000000e+00> : vector<4x128xf32>
    %373 = tpu.matmul %372, %4, %cst_90 {dimension_numbers = #tpu.dot_dimension_numbers<[1], [0], [0], [1], [0, 0, 1, 1], [], []>} : vector<4x48xf32>, vector<48x128xf32>, vector<4x128xf32> -> vector<4x128xf32>
    %374 = tpu.concatenate %370, %373 in 0 : vector<4x128xf32>, vector<4x128xf32> -> vector<8x128xf32>
    %375 = arith.addf %374, %5 : vector<8x128xf32>
    %376 = vector.extract_strided_slice %375 {offsets = [0, 0], sizes = [8, 32], strides = [1, 1]} : vector<8x128xf32> to vector<8x32xf32>
    %377 = arith.negf %376 : vector<8x32xf32>
    %378 = math.exp %377 : vector<8x32xf32>
    %cst_91 = arith.constant 1.000000e+00 : f32
    %379 = vector.broadcast %cst_91 : f32 to vector<8x32xf32>
    %380 = arith.addf %379, %378 : vector<8x32xf32>
    %381 = arith.divf %379, %380 : vector<8x32xf32>
    %382 = vector.extract_strided_slice %375 {offsets = [0, 32], sizes = [8, 32], strides = [1, 1]} : vector<8x128xf32> to vector<8x32xf32>
    %383 = arith.negf %382 : vector<8x32xf32>
    %384 = math.exp %383 : vector<8x32xf32>
    %cst_92 = arith.constant 1.000000e+00 : f32
    %385 = vector.broadcast %cst_92 : f32 to vector<8x32xf32>
    %386 = arith.addf %385, %384 : vector<8x32xf32>
    %387 = arith.divf %385, %386 : vector<8x32xf32>
    %388 = vector.extract_strided_slice %375 {offsets = [0, 64], sizes = [8, 32], strides = [1, 1]} : vector<8x128xf32> to vector<8x32xf32>
    %389 = math.tanh %388 : vector<8x32xf32>
    %390 = vector.extract_strided_slice %375 {offsets = [0, 96], sizes = [8, 32], strides = [1, 1]} : vector<8x128xf32> to vector<8x32xf32>
    %391 = arith.negf %390 : vector<8x32xf32>
    %392 = math.exp %391 : vector<8x32xf32>
    %cst_93 = arith.constant 1.000000e+00 : f32
    %393 = vector.broadcast %cst_93 : f32 to vector<8x32xf32>
    %394 = arith.addf %393, %392 : vector<8x32xf32>
    %395 = arith.divf %393, %394 : vector<8x32xf32>
    %396 = arith.mulf %387, %352 : vector<8x32xf32>
    %397 = arith.mulf %381, %389 : vector<8x32xf32>
    %398 = arith.addf %396, %397 : vector<8x32xf32>
    %399 = math.tanh %398 : vector<8x32xf32>
    %400 = arith.mulf %395, %399 : vector<8x32xf32>
    %401 = vector.broadcast %c6_i32 : i32 to vector<8x1xi32>
    %402 = arith.cmpi sge, %401, %1 : vector<8x1xi32>
    %403 = vector.broadcast %c6_i32 : i32 to vector<8x1xi32>
    %404 = arith.cmpi slt, %403, %2 : vector<8x1xi32>
    %405 = arith.andi %402, %404 : vector<8x1xi1>
    %406 = vector.shape_cast %405 : vector<8x1xi1> to vector<8x1xi1>
    %407 = vector.broadcast %406 : vector<8x1xi1> to vector<8x32xi1>
    %408 = arith.select %407, %400, %349 : vector<8x32xi1>, vector<8x32xf32>
    %409 = vector.shape_cast %405 : vector<8x1xi1> to vector<8x1xi1>
    %410 = vector.broadcast %409 : vector<8x1xi1> to vector<8x32xi1>
    %411 = arith.select %410, %398, %352 : vector<8x32xi1>, vector<8x32xf32>
    %cst_94 = arith.constant 0.000000e+00 : f32
    %412 = vector.shape_cast %405 : vector<8x1xi1> to vector<8x1xi1>
    %413 = vector.broadcast %412 : vector<8x1xi1> to vector<8x32xi1>
    %414 = vector.broadcast %cst_94 : f32 to vector<8x32xf32>
    %415 = arith.select %413, %400, %414 : vector<8x32xi1>, vector<8x32xf32>
    %416 = arith.index_cast %c6_i32 : i32 to index
    %c0_95 = arith.constant 0 : index
    %c0_96 = arith.constant 0 : index
    %417 = vector.load %arg6[%416, %c0_95, %c0_96] : memref<8x8x32xf32, #tpu.memory_space<vmem>>, vector<1x8x32xf32>
    %418 = vector.shape_cast %417 : vector<1x8x32xf32> to vector<8x32xf32>
    %419 = vector.shape_cast %415 : vector<8x32xf32> to vector<1x8x32xf32>
    tpu.vector_store %arg6[%416, %c0_95, %c0_96], %419 {strides = array<i32>} : memref<8x8x32xf32, #tpu.memory_space<vmem>>, vector<1x8x32xf32>,
    %c7_i32_97 = arith.constant 7 : i32
    %420 = arith.index_cast %c7_i32_97 : i32 to index
    %c0_98 = arith.constant 0 : index
    %c0_99 = arith.constant 0 : index
    %421 = vector.load %arg1[%420, %c0_98, %c0_99] : memref<8x4x16xf32, #tpu.memory_space<vmem>>, vector<1x4x16xf32>
    %422 = vector.shape_cast %421 : vector<1x4x16xf32> to vector<4x16xf32>
    %c7_i32_100 = arith.constant 7 : i32
    %423 = arith.subi %c7_i32_100, %c7_i32_97 : i32
    %424 = arith.index_cast %423 : i32 to index
    %c0_101 = arith.constant 0 : index
    %c0_102 = arith.constant 0 : index
    %425 = vector.load %arg1[%424, %c0_101, %c0_102] : memref<8x4x16xf32, #tpu.memory_space<vmem>>, vector<1x4x16xf32>
    %426 = vector.shape_cast %425 : vector<1x4x16xf32> to vector<4x16xf32>
    %427 = vector.extract_strided_slice %408 {offsets = [0, 0], sizes = [4, 32], strides = [1, 1]} : vector<8x32xf32> to vector<4x32xf32>
    %428 = tpu.concatenate %422, %427 in 1 : vector<4x16xf32>, vector<4x32xf32> -> vector<4x48xf32>
    %cst_103 = arith.constant dense<0.000000e+00> : vector<4x128xf32>
    %429 = tpu.matmul %428, %3, %cst_103 {dimension_numbers = #tpu.dot_dimension_numbers<[1], [0], [0], [1], [0, 0, 1, 1], [], []>} : vector<4x48xf32>, vector<48x128xf32>, vector<4x128xf32> -> vector<4x128xf32>
    %430 = vector.extract_strided_slice %408 {offsets = [4, 0], sizes = [4, 32], strides = [1, 1]} : vector<8x32xf32> to vector<4x32xf32>
    %431 = tpu.concatenate %426, %430 in 1 : vector<4x16xf32>, vector<4x32xf32> -> vector<4x48xf32>
    %cst_104 = arith.constant dense<0.000000e+00> : vector<4x128xf32>
    %432 = tpu.matmul %431, %4, %cst_104 {dimension_numbers = #tpu.dot_dimension_numbers<[1], [0], [0], [1], [0, 0, 1, 1], [], []>} : vector<4x48xf32>, vector<48x128xf32>, vector<4x128xf32> -> vector<4x128xf32>
    %433 = tpu.concatenate %429, %432 in 0 : vector<4x128xf32>, vector<4x128xf32> -> vector<8x128xf32>
    %434 = arith.addf %433, %5 : vector<8x128xf32>
    %435 = vector.extract_strided_slice %434 {offsets = [0, 0], sizes = [8, 32], strides = [1, 1]} : vector<8x128xf32> to vector<8x32xf32>
    %436 = arith.negf %435 : vector<8x32xf32>
    %437 = math.exp %436 : vector<8x32xf32>
    %cst_105 = arith.constant 1.000000e+00 : f32
    %438 = vector.broadcast %cst_105 : f32 to vector<8x32xf32>
    %439 = arith.addf %438, %437 : vector<8x32xf32>
    %440 = arith.divf %438, %439 : vector<8x32xf32>
    %441 = vector.extract_strided_slice %434 {offsets = [0, 32], sizes = [8, 32], strides = [1, 1]} : vector<8x128xf32> to vector<8x32xf32>
    %442 = arith.negf %441 : vector<8x32xf32>
    %443 = math.exp %442 : vector<8x32xf32>
    %cst_106 = arith.constant 1.000000e+00 : f32
    %444 = vector.broadcast %cst_106 : f32 to vector<8x32xf32>
    %445 = arith.addf %444, %443 : vector<8x32xf32>
    %446 = arith.divf %444, %445 : vector<8x32xf32>
    %447 = vector.extract_strided_slice %434 {offsets = [0, 64], sizes = [8, 32], strides = [1, 1]} : vector<8x128xf32> to vector<8x32xf32>
    %448 = math.tanh %447 : vector<8x32xf32>
    %449 = vector.extract_strided_slice %434 {offsets = [0, 96], sizes = [8, 32], strides = [1, 1]} : vector<8x128xf32> to vector<8x32xf32>
    %450 = arith.negf %449 : vector<8x32xf32>
    %451 = math.exp %450 : vector<8x32xf32>
    %cst_107 = arith.constant 1.000000e+00 : f32
    %452 = vector.broadcast %cst_107 : f32 to vector<8x32xf32>
    %453 = arith.addf %452, %451 : vector<8x32xf32>
    %454 = arith.divf %452, %453 : vector<8x32xf32>
    %455 = arith.mulf %446, %411 : vector<8x32xf32>
    %456 = arith.mulf %440, %448 : vector<8x32xf32>
    %457 = arith.addf %455, %456 : vector<8x32xf32>
    %458 = math.tanh %457 : vector<8x32xf32>
    %459 = arith.mulf %454, %458 : vector<8x32xf32>
    %460 = vector.broadcast %c7_i32_97 : i32 to vector<8x1xi32>
    %461 = arith.cmpi sge, %460, %1 : vector<8x1xi32>
    %462 = vector.broadcast %c7_i32_97 : i32 to vector<8x1xi32>
    %463 = arith.cmpi slt, %462, %2 : vector<8x1xi32>
    %464 = arith.andi %461, %463 : vector<8x1xi1>
    %465 = vector.shape_cast %464 : vector<8x1xi1> to vector<8x1xi1>
    %466 = vector.broadcast %465 : vector<8x1xi1> to vector<8x32xi1>
    %467 = arith.select %466, %459, %408 : vector<8x32xi1>, vector<8x32xf32>
    %468 = vector.shape_cast %464 : vector<8x1xi1> to vector<8x1xi1>
    %469 = vector.broadcast %468 : vector<8x1xi1> to vector<8x32xi1>
    %470 = arith.select %469, %457, %411 : vector<8x32xi1>, vector<8x32xf32>
    %cst_108 = arith.constant 0.000000e+00 : f32
    %471 = vector.shape_cast %464 : vector<8x1xi1> to vector<8x1xi1>
    %472 = vector.broadcast %471 : vector<8x1xi1> to vector<8x32xi1>
    %473 = vector.broadcast %cst_108 : f32 to vector<8x32xf32>
    %474 = arith.select %472, %459, %473 : vector<8x32xi1>, vector<8x32xf32>
    %475 = arith.index_cast %c7_i32_97 : i32 to index
    %c0_109 = arith.constant 0 : index
    %c0_110 = arith.constant 0 : index
    %476 = vector.load %arg6[%475, %c0_109, %c0_110] : memref<8x8x32xf32, #tpu.memory_space<vmem>>, vector<1x8x32xf32>
    %477 = vector.shape_cast %476 : vector<1x8x32xf32> to vector<8x32xf32>
    %478 = vector.shape_cast %474 : vector<8x32xf32> to vector<1x8x32xf32>
    tpu.vector_store %arg6[%475, %c0_109, %c0_110], %478 {strides = array<i32>} : memref<8x8x32xf32, #tpu.memory_space<vmem>>, vector<1x8x32xf32>,
    %c8_i32 = arith.constant 8 : i32
    return
  }
  func.func @transform_0(%arg0: i32) -> (i32, i32, i32) {
    %c0_i32 = arith.constant 0 : i32
    %c0_i32_0 = arith.constant 0 : i32
    %c0_i32_1 = arith.constant 0 : i32
    %c0_i32_2 = arith.constant 0 : i32
    return %c0_i32, %c0_i32_0, %c0_i32_1 : i32, i32, i32
  }
  func.func @transform_1(%arg0: i32) -> (i32, i32) {
    %c0_i32 = arith.constant 0 : i32
    %c0_i32_0 = arith.constant 0 : i32
    %c0_i32_1 = arith.constant 0 : i32
    return %c0_i32, %c0_i32_0 : i32, i32
  }
  func.func @transform_2(%arg0: i32) -> (i32, i32) {
    %c0_i32 = arith.constant 0 : i32
    %c0_i32_0 = arith.constant 0 : i32
    %c0_i32_1 = arith.constant 0 : i32
    return %c0_i32, %c0_i32_0 : i32, i32
  }
  func.func @transform_3(%arg0: i32) -> (i32, i32) {
    %c0_i32 = arith.constant 0 : i32
    %c0_i32_0 = arith.constant 0 : i32
    %c0_i32_1 = arith.constant 0 : i32
    return %c0_i32, %c0_i32_0 : i32, i32
  }
  func.func @transform_4(%arg0: i32) -> (i32, i32) {
    %c0_i32 = arith.constant 0 : i32
    %c0_i32_0 = arith.constant 0 : i32
    %c0_i32_1 = arith.constant 0 : i32
    return %c0_i32, %c0_i32_0 : i32, i32
  }
  func.func @transform_5(%arg0: i32) -> (i32, i32, i32) {
    %c0_i32 = arith.constant 0 : i32
    %c0_i32_0 = arith.constant 0 : i32
    %c0_i32_1 = arith.constant 0 : i32
    %c0_i32_2 = arith.constant 0 : i32
    return %c0_i32, %c0_i32_0, %c0_i32_1 : i32, i32, i32
  }
}

</mosaic_0001>

<llo_original>
// kernel: sentence_rnn_forward.1
$region0: #{sentence_rnn_forward.1}
  #allocation0 [shape = 'u32[]', space=smem, size = 0x4, offset = 0x4, fixed_abs, tag = 'smem constant byte address 0x4 - core index']
  #allocation1 [shape = 'u32[144,128]{1,0:T(1,128)}', space=vmem, size = 0x12000, scoped, tag = 'internal scratch']
  %s0 = inlined_call_operand.vmem [shape: f32[8,4,16], index: 0, kind: input, shape index: {}]
  %s1 = inlined_call_operand.vmem [shape: s32[8,2], index: 1, kind: input, shape index: {}]
  %s2 = inlined_call_operand.vmem [shape: f32[48,128], index: 2, kind: input, shape index: {}]
  %s3 = inlined_call_operand.vmem [shape: f32[48,128], index: 3, kind: input, shape index: {}]
  %s4 = inlined_call_operand.vmem [shape: f32[8,128], index: 4, kind: input, shape index: {}]
  %s5 = inlined_call_operand.vmem [shape: f32[8,8,32], index: 5, kind: output, shape index: {}]
  %s6 = sld [smem:[#allocation0]]
  $region30: #{sentence_rnn_forward.1} parent=0
    _
  %s8 = ssub.s32 1, %s6
  %s9 = scalar_select 0, %s8, %s6
  // Predicated region
  $region2: #{sentence_rnn_forward.1} parent=0 // pred_check
    _
  $region3: #{sentence_rnn_forward.1} parent=0 // pred_check_branch
    %11 = sbr.rel (0) target = $region5
  $region4: #{sentence_rnn_forward.1} parent=0 // pred_region
    _
  $region5: #{sentence_rnn_forward.1} parent=0 // pred_fallthru
    _
  // Predicated region
  $region6: #{sentence_rnn_forward.1} parent=0 // pred_check
    _
  $region7: #{sentence_rnn_forward.1} parent=0 // pred_check_branch
    %13 = sbr.rel (0) target = $region9
  $region8: #{sentence_rnn_forward.1} parent=0 // pred_region
    _
  $region9: #{sentence_rnn_forward.1} parent=0 // pred_fallthru
    _
  // Predicated region
  $region10: #{sentence_rnn_forward.1} parent=0 // pred_check
    _
  $region11: #{sentence_rnn_forward.1} parent=0 // pred_check_branch
    %15 = sbr.rel (0) target = $region13
  $region12: #{sentence_rnn_forward.1} parent=0 // pred_region
    _
  $region13: #{sentence_rnn_forward.1} parent=0 // pred_fallthru
    _
  // Predicated region
  $region14: #{sentence_rnn_forward.1} parent=0 // pred_check
    _
  $region15: #{sentence_rnn_forward.1} parent=0 // pred_check_branch
    %17 = sbr.rel (0) target = $region17
  $region16: #{sentence_rnn_forward.1} parent=0 // pred_region
    _
  $region17: #{sentence_rnn_forward.1} parent=0 // pred_fallthru
    _
  // Predicated region
  $region18: #{sentence_rnn_forward.1} parent=0 // pred_check
    _
  $region19: #{sentence_rnn_forward.1} parent=0 // pred_check_branch
    %19 = sbr.rel (0) target = $region21
  $region20: #{sentence_rnn_forward.1} parent=0 // pred_region
    _
  $region21: #{sentence_rnn_forward.1} parent=0 // pred_fallthru
    _
  %v20 = vld [vmem:[%s1] sm:$0xff]
  %v21 = vld [vmem:[%s2] sm:$0xff]
  %v22 = vld [vmem:[%s2 + $0x8] sm:$0xff]
  %v23 = vld [vmem:[%s2 + $0x10] sm:$0xff]
  %v24 = vld [vmem:[%s2 + $0x18] sm:$0xff]
  %v25 = vld [vmem:[%s2 + $0x20] sm:$0xff]
  %v26 = vld [vmem:[%s2 + $0x28] sm:$0xff]
  %v27 = vld [vmem:[%s3] sm:$0xff]
  %v28 = vld [vmem:[%s3 + $0x8] sm:$0xff]
  %v29 = vld [vmem:[%s3 + $0x10] sm:$0xff]
  %v30 = vld [vmem:[%s3 + $0x18] sm:$0xff]
  %v31 = vld [vmem:[%s3 + $0x20] sm:$0xff]
  %v32 = vld [vmem:[%s3 + $0x28] sm:$0xff]
  %v33 = vld [vmem:[%s4] sm:$0xff]
  %v34 = vld [vmem:[%s0] sm:$0xf]
  %s35 = scalar_lea.vmem %s0, 28
  %v36 = vld [vmem:[%s35] sm:$0xf]
  %vm37 = vcmask 130048
  %v38 = vsel %vm37, %v34, 0.0
  %vm39 = vcmask 392192
  %v41 = vsel %vm39, %v38, 0
  %43 = vmatprep.subr.mxu0 0.0
  %44 = vmatpush1.msra.mxu0 %v21
  %45 = vmatprep.subr.mxu0 0.0
  %46 = vmatpush1.msra.mxu0 %v22
  %47 = vmatprep.subr.mxu0 0.0
  %48 = vmatpush1.msra.mxu0 %v23
  %49 = vmatprep.subr.mxu0 0.0
  %50 = vmatpush1.msra.mxu0 %v24
  %51 = vmatprep.subr.mxu0 0.0
  %52 = vmatpush1.msra.mxu0 %v25
  %53 = vmatprep.subr.mxu0 0.0
  %54 = vmatpush1.msra.mxu0 %v26
  %55 = vmatprep.subr.mxu0 0.0
  %56 = vmatpush1.msra.mxu0 0.0
  %57 = vmatprep.subr.mxu0 0.0
  %58 = vmatpush1.msra.mxu0 0.0
  %59 = vmatprep.subr.mxu0 0.0
  %60 = vmatpush1.msra.mxu0 0.0
  %61 = vmatprep.subr.mxu0 0.0
  %62 = vmatpush1.msra.mxu0 0.0
  %63 = vmatprep.subr.mxu0 0.0
  %64 = vmatpush1.msra.mxu0 0.0
  %65 = vmatprep.subr.mxu0 0.0
  %66 = vmatpush1.msra.mxu0 0.0
  %67 = vmatprep.subr.mxu0 0.0
  %68 = vmatpush1.msra.mxu0 0.0
  %69 = vmatprep.subr.mxu0 0.0
  %70 = vmatpush1.msra.mxu0 0.0
  %71 = vmatprep.subr.mxu0 0.0
  %72 = vmatpush1.msra.mxu0 0.0
  %73 = vmatprep.subr.mxu0 0.0
  %74 = vmatpush1.msra.mxu0 0.0
  %75 = vmatprep.subr.mxu0 0.0
  %76 = vmatpush1.msra.mxu0 0.0
  %77 = vmatprep.subr.mxu0 0.0
  %78 = vmatpush1.msra.mxu0 0.0
  %79 = vmatprep.subr.mxu0 0.0
  %80 = vmatpush1.msra.mxu0 0.0
  %81 = vmatprep.subr.mxu0 0.0
  %82 = vmatpush1.msra.mxu0 0.0
  %83 = vmatprep.subr.mxu0 0.0
  %84 = vmatpush1.msra.mxu0 0.0
  %85 = vmatprep.subr.mxu0 0.0
  %86 = vmatpush1.msra.mxu0 0.0
  %87 = vmatprep.subr.mxu0 0.0
  %88 = vmatpush1.msra.mxu0 0.0
  %89 = vmatprep.subr.mxu0 0.0
  %90 = vmatpush1.msra.mxu0 0.0
  %91 = vmatprep.subr.mxu0 0.0
  %92 = vmatpush1.msra.mxu0 0.0
  %93 = vmatprep.subr.mxu0 0.0
  %94 = vmatpush1.msra.mxu0 0.0
  %95 = vmatprep.subr.mxu0 0.0
  %96 = vmatpush1.msra.mxu0 0.0
  %97 = vmatprep.subr.mxu0 0.0
  %98 = vmatpush1.msra.mxu0 0.0
  %99 = vmatprep.subr.mxu0 0.0
  %100 = vmatpush1.msra.mxu0 0.0
  %101 = vmatprep.subr.mxu0 0.0
  %102 = vmatpush1.msra.mxu0 0.0
  %103 = vmatprep.subr.mxu0 0.0
  %104 = vmatpush1.msra.mxu0 0.0
  %105 = vmatprep.subr.mxu0 0.0
  %106 = vmatpush1.msra.mxu0 0.0
  %107 = vmatprep.mubr.f32.mxu0 0.0
  %108 = vmatmul.mubr.f32.gmra.mrb[0].mxu0 %v41
  %v109 = vpop.f32.mrb[0].mxu0
  %v110 = vadd.f32 0.0, %v109
  %v111 = vpop.f32.mrb[0].mxu0
  %112 = vdwg.mxu0
  %v113 = vsel %vm37, %v36, 0.0
  %v115 = vsel %vm39, %v113, 0
  %117 = vmatprep.subr.mxu0 0.0
  %118 = vmatpush1.msra.mxu0 %v27
  %119 = vmatprep.subr.mxu0 0.0
  %120 = vmatpush1.msra.mxu0 %v28
  %121 = vmatprep.subr.mxu0 0.0
  %122 = vmatpush1.msra.mxu0 %v29
  %123 = vmatprep.subr.mxu0 0.0
  %124 = vmatpush1.msra.mxu0 %v30
  %125 = vmatprep.subr.mxu0 0.0
  %126 = vmatpush1.msra.mxu0 %v31
  %127 = vmatprep.subr.mxu0 0.0
  %128 = vmatpush1.msra.mxu0 %v32
  %129 = vmatprep.subr.mxu0 0.0
  %130 = vmatpush1.msra.mxu0 0.0
  %131 = vmatprep.subr.mxu0 0.0
  %132 = vmatpush1.msra.mxu0 0.0
  %133 = vmatprep.subr.mxu0 0.0
  %134 = vmatpush1.msra.mxu0 0.0
  %135 = vmatprep.subr.mxu0 0.0
  %136 = vmatpush1.msra.mxu0 0.0
  %137 = vmatprep.subr.mxu0 0.0
  %138 = vmatpush1.msra.mxu0 0.0
  %139 = vmatprep.subr.mxu0 0.0
  %140 = vmatpush1.msra.mxu0 0.0
  %141 = vmatprep.subr.mxu0 0.0
  %142 = vmatpush1.msra.mxu0 0.0
  %143 = vmatprep.subr.mxu0 0.0
  %144 = vmatpush1.msra.mxu0 0.0
  %145 = vmatprep.subr.mxu0 0.0
  %146 = vmatpush1.msra.mxu0 0.0
  %147 = vmatprep.subr.mxu0 0.0
  %148 = vmatpush1.msra.mxu0 0.0
  %149 = vmatprep.subr.mxu0 0.0
  %150 = vmatpush1.msra.mxu0 0.0
  %151 = vmatprep.subr.mxu0 0.0
  %152 = vmatpush1.msra.mxu0 0.0
  %153 = vmatprep.subr.mxu0 0.0
  %154 = vmatpush1.msra.mxu0 0.0
  %155 = vmatprep.subr.mxu0 0.0
  %156 = vmatpush1.msra.mxu0 0.0
  %157 = vmatprep.subr.mxu0 0.0
  %158 = vmatpush1.msra.mxu0 0.0
  %159 = vmatprep.subr.mxu0 0.0
  %160 = vmatpush1.msra.mxu0 0.0
  %161 = vmatprep.subr.mxu0 0.0
  %162 = vmatpush1.msra.mxu0 0.0
  %163 = vmatprep.subr.mxu0 0.0
  %164 = vmatpush1.msra.mxu0 0.0
  %165 = vmatprep.subr.mxu0 0.0
  %166 = vmatpush1.msra.mxu0 0.0
  %167 = vmatprep.subr.mxu0 0.0
  %168 = vmatpush1.msra.mxu0 0.0
  %169 = vmatprep.subr.mxu0 0.0
  %170 = vmatpush1.msra.mxu0 0.0
  %171 = vmatprep.subr.mxu0 0.0
  %172 = vmatpush1.msra.mxu0 0.0
  %173 = vmatprep.subr.mxu0 0.0
  %174 = vmatpush1.msra.mxu0 0.0
  %175 = vmatprep.subr.mxu0 0.0
  %176 = vmatpush1.msra.mxu0 0.0
  %177 = vmatprep.subr.mxu0 0.0
  %178 = vmatpush1.msra.mxu0 0.0
  %179 = vmatprep.subr.mxu0 0.0
  %180 = vmatpush1.msra.mxu0 0.0
  %181 = vmatprep.mubr.f32.mxu0 0.0
  %182 = vmatmul.mubr.f32.gmra.mrb[0].mxu0 %v115
  %v183 = vpop.f32.mrb[0].mxu0
  %v184 = vadd.f32 0.0, %v183
  %v185 = vpop.f32.mrb[0].mxu0
  %186 = vdwg.mxu0
  %v188 = vrot.slane %v184, 4
  %vm190 = vcmask 1043456
  %v191 = vsel %vm190, %v110, %v188
  %v192 = vadd.f32 %v191, %v33
  %v193 = vxor.u32 %v192, 2147483648
  %v194 = vmul.f32 %v193, 1.442695
  %v195 = vpow.pop %v194
  %v196 = vadd.f32 %v195, 1.0
  %v197 = vrcp.pop %v196
  %v198 = vmul.f32 1.0, %v197
  %v199 = vtanh.pop %v192
  %v200 = vmul.f32 %v198, 0.0
  %202 = vrot.lane.b32.xlu0 %v199, 64
  %v203 = vpop.permute.xlu0 %202
  %v205 = vmul.f32 %v198, %v203
  %207 = vrot.lane.b32.xlu0 %v205, 32
  %v208 = vpop.permute.xlu0 %207
  %v210 = vadd.f32 %v200, %v208
  %v211 = vtanh.pop %v210
  %213 = vrot.lane.b32.xlu0 %v211, 64
  %v214 = vpop.permute.xlu0 %213
  %v216 = vmul.f32 %v198, %v214
  %vm217 = vcmp.le.s32.totalorder %v20, 0
  %vm218 = vcmp.gt.s32.totalorder %v20, 0
  %v219 = vsel %vm218, 1, 0
  %220 = vrot.lane.b32.xlu0 %v219, 127
  %v221 = vpop.permute.xlu0 %220
  %vm222 = vcmp.ne.s32.totalorder %v221, 0
  %vm223 = vmand %vm217, %vm222
  %v224 = vsel %vm223, 1, 0
  %225 = vset.pattern.permute.xlu0 0
  %226 = vperm.xlu0 %225, %v224
  %v227 = vpop.permute.xlu0 %226
  %vm228 = vcmp.eq.s32.totalorder %v227, 1
  %v229 = vsel %vm228, %v216, 0.0
  %v230 = vsel %vm228, %v210, 0.0
  %232 = vrot.lane.b32.xlu0 %v229, 32
  %v233 = vpop.permute.xlu0 %232
  %vm235 = vcmask 261120
  %236 = vst.msk [vmem:[%s5] sm:$0xff] %vm235, %v233
  %s237 = scalar_lea.vmem %s0, 4
  %v238 = vld [vmem:[%s237] sm:$0xf]
  %s239 = scalar_lea.vmem %s0, 24
  %v240 = vld [vmem:[%s239] sm:$0xf]
  %241 = vrot.lane.b32.xlu0 %v229, 48
  %v242 = vpop.permute.xlu0 %241
  %v244 = vsel %vm37, %v238, %v242
  %v246 = vsel %vm39, %v244, 0
  %248 = vmatprep.subr.mxu0 0.0
  %249 = vmatpush1.msra.mxu0 %v21
  %250 = vmatprep.subr.mxu0 0.0
  %251 = vmatpush1.msra.mxu0 %v22
  %252 = vmatprep.subr.mxu0 0.0
  %253 = vmatpush1.msra.mxu0 %v23
  %254 = vmatprep.subr.mxu0 0.0
  %255 = vmatpush1.msra.mxu0 %v24
  %256 = vmatprep.subr.mxu0 0.0
  %257 = vmatpush1.msra.mxu0 %v25
  %258 = vmatprep.subr.mxu0 0.0
  %259 = vmatpush1.msra.mxu0 %v26
  %260 = vmatprep.subr.mxu0 0.0
  %261 = vmatpush1.msra.mxu0 0.0
  %262 = vmatprep.subr.mxu0 0.0
  %263 = vmatpush1.msra.mxu0 0.0
  %264 = vmatprep.subr.mxu0 0.0
  %265 = vmatpush1.msra.mxu0 0.0
  %266 = vmatprep.subr.mxu0 0.0
  %267 = vmatpush1.msra.mxu0 0.0
  %268 = vmatprep.subr.mxu0 0.0
  %269 = vmatpush1.msra.mxu0 0.0
  %270 = vmatprep.subr.mxu0 0.0
  %271 = vmatpush1.msra.mxu0 0.0
  %272 = vmatprep.subr.mxu0 0.0
  %273 = vmatpush1.msra.mxu0 0.0
  %274 = vmatprep.subr.mxu0 0.0
  %275 = vmatpush1.msra.mxu0 0.0
  %276 = vmatprep.subr.mxu0 0.0
  %277 = vmatpush1.msra.mxu0 0.0
  %278 = vmatprep.subr.mxu0 0.0
  %279 = vmatpush1.msra.mxu0 0.0
  %280 = vmatprep.subr.mxu0 0.0
  %281 = vmatpush1.msra.mxu0 0.0
  %282 = vmatprep.subr.mxu0 0.0
  %283 = vmatpush1.msra.mxu0 0.0
  %284 = vmatprep.subr.mxu0 0.0
  %285 = vmatpush1.msra.mxu0 0.0
  %286 = vmatprep.subr.mxu0 0.0
  %287 = vmatpush1.msra.mxu0 0.0
  %288 = vmatprep.subr.mxu0 0.0
  %289 = vmatpush1.msra.mxu0 0.0
  %290 = vmatprep.subr.mxu0 0.0
  %291 = vmatpush1.msra.mxu0 0.0
  %292 = vmatprep.subr.mxu0 0.0
  %293 = vmatpush1.msra.mxu0 0.0
  %294 = vmatprep.subr.mxu0 0.0
  %295 = vmatpush1.msra.mxu0 0.0
  %296 = vmatprep.subr.mxu0 0.0
  %297 = vmatpush1.msra.mxu0 0.0
  %298 = vmatprep.subr.mxu0 0.0
  %299 = vmatpush1.msra.mxu0 0.0
  %300 = vmatprep.subr.mxu0 0.0
  %301 = vmatpush1.msra.mxu0 0.0
  %302 = vmatprep.subr.mxu0 0.0
  %303 = vmatpush1.msra.mxu0 0.0
  %304 = vmatprep.subr.mxu0 0.0
  %305 = vmatpush1.msra.mxu0 0.0
  %306 = vmatprep.subr.mxu0 0.0
  %307 = vmatpush1.msra.mxu0 0.0
  %308 = vmatprep.subr.mxu0 0.0
  %309 = vmatpush1.msra.mxu0 0.0
  %310 = vmatprep.subr.mxu0 0.0
  %311 = vmatpush1.msra.mxu0 0.0
  %312 = vmatprep.mubr.f32.mxu0 0.0
  %313 = vmatmul.mubr.f32.gmra.mrb[0].mxu0 %v246
  %v314 = vpop.f32.mrb[0].mxu0
  %v315 = vadd.f32 0.0, %v314
  %v316 = vpop.f32.mrb[0].mxu0
  %317 = vdwg.mxu0
  %v318 = vrot.slane %v229, 4
  %319 = vrot.lane.b32.xlu0 %v318, 48
  %v320 = vpop.permute.xlu0 %319
  %v322 = vsel %vm37, %v240, %v320
  %v324 = vsel %vm39, %v322, 0
  %326 = vmatprep.subr.mxu0 0.0
  %327 = vmatpush1.msra.mxu0 %v27
  %328 = vmatprep.subr.mxu0 0.0
  %329 = vmatpush1.msra.mxu0 %v28
  %330 = vmatprep.subr.mxu0 0.0
  %331 = vmatpush1.msra.mxu0 %v29
  %332 = vmatprep.subr.mxu0 0.0
  %333 = vmatpush1.msra.mxu0 %v30
  %334 = vmatprep.subr.mxu0 0.0
  %335 = vmatpush1.msra.mxu0 %v31
  %336 = vmatprep.subr.mxu0 0.0
  %337 = vmatpush1.msra.mxu0 %v32
  %338 = vmatprep.subr.mxu0 0.0
  %339 = vmatpush1.msra.mxu0 0.0
  %340 = vmatprep.subr.mxu0 0.0
  %341 = vmatpush1.msra.mxu0 0.0
  %342 = vmatprep.subr.mxu0 0.0
  %343 = vmatpush1.msra.mxu0 0.0
  %344 = vmatprep.subr.mxu0 0.0
  %345 = vmatpush1.msra.mxu0 0.0
  %346 = vmatprep.subr.mxu0 0.0
  %347 = vmatpush1.msra.mxu0 0.0
  %348 = vmatprep.subr.mxu0 0.0
  %349 = vmatpush1.msra.mxu0 0.0
  %350 = vmatprep.subr.mxu0 0.0
  %351 = vmatpush1.msra.mxu0 0.0
  %352 = vmatprep.subr.mxu0 0.0
  %353 = vmatpush1.msra.mxu0 0.0
  %354 = vmatprep.subr.mxu0 0.0
  %355 = vmatpush1.msra.mxu0 0.0
  %356 = vmatprep.subr.mxu0 0.0
  %357 = vmatpush1.msra.mxu0 0.0
  %358 = vmatprep.subr.mxu0 0.0
  %359 = vmatpush1.msra.mxu0 0.0
  %360 = vmatprep.subr.mxu0 0.0
  %361 = vmatpush1.msra.mxu0 0.0
  %362 = vmatprep.subr.mxu0 0.0
  %363 = vmatpush1.msra.mxu0 0.0
  %364 = vmatprep.subr.mxu0 0.0
  %365 = vmatpush1.msra.mxu0 0.0
  %366 = vmatprep.subr.mxu0 0.0
  %367 = vmatpush1.msra.mxu0 0.0
  %368 = vmatprep.subr.mxu0 0.0
  %369 = vmatpush1.msra.mxu0 0.0
  %370 = vmatprep.subr.mxu0 0.0
  %371 = vmatpush1.msra.mxu0 0.0
  %372 = vmatprep.subr.mxu0 0.0
  %373 = vmatpush1.msra.mxu0 0.0
  %374 = vmatprep.subr.mxu0 0.0
  %375 = vmatpush1.msra.mxu0 0.0
  %376 = vmatprep.subr.mxu0 0.0
  %377 = vmatpush1.msra.mxu0 0.0
  %378 = vmatprep.subr.mxu0 0.0
  %379 = vmatpush1.msra.mxu0 0.0
  %380 = vmatprep.subr.mxu0 0.0
  %381 = vmatpush1.msra.mxu0 0.0
  %382 = vmatprep.subr.mxu0 0.0
  %383 = vmatpush1.msra.mxu0 0.0
  %384 = vmatprep.subr.mxu0 0.0
  %385 = vmatpush1.msra.mxu0 0.0
  %386 = vmatprep.subr.mxu0 0.0
  %387 = vmatpush1.msra.mxu0 0.0
  %388 = vmatprep.subr.mxu0 0.0
  %389 = vmatpush1.msra.mxu0 0.0
  %390 = vmatprep.mubr.f32.mxu0 0.0
  %391 = vmatmul.mubr.f32.gmra.mrb[0].mxu0 %v324
  %v392 = vpop.f32.mrb[0].mxu0
  %v393 = vadd.f32 0.0, %v392
  %v394 = vpop.f32.mrb[0].mxu0
  %395 = vdwg.mxu0
  %v397 = vrot.slane %v393, 4
  %v399 = vsel %vm190, %v315, %v397
  %v400 = vadd.f32 %v399, %v33
  %v401 = vxor.u32 %v400, 2147483648
  %v402 = vmul.f32 %v401, 1.442695
  %v403 = vpow.pop %v402
  %v404 = vadd.f32 %v403, 1.0
  %v405 = vrcp.pop %v404
  %v406 = vmul.f32 1.0, %v405
  %v407 = vtanh.pop %v400
  %v408 = vmul.f32 %v406, %v230
  %410 = vrot.lane.b32.xlu0 %v407, 64
  %v411 = vpop.permute.xlu0 %410
  %v413 = vmul.f32 %v406, %v411
  %415 = vrot.lane.b32.xlu0 %v413, 32
  %v416 = vpop.permute.xlu0 %415
  %v418 = vadd.f32 %v408, %v416
  %v419 = vtanh.pop %v418
  %421 = vrot.lane.b32.xlu0 %v419, 64
  %v422 = vpop.permute.xlu0 %421
  %v424 = vmul.f32 %v406, %v422
  %vm425 = vcmp.le.s32.totalorder %v20, 1
  %vm426 = vcmp.gt.s32.totalorder %v20, 1
  %v427 = vsel %vm426, 1, 0
  %428 = vrot.lane.b32.xlu0 %v427, 127
  %v429 = vpop.permute.xlu0 %428
  %vm430 = vcmp.ne.s32.totalorder %v429, 0
  %vm431 = vmand %vm425, %vm430
  %v432 = vsel %vm431, 1, 0
  %433 = vset.pattern.permute.xlu0 0
  %434 = vperm.xlu0 %433, %v432
  %v435 = vpop.permute.xlu0 %434
  %vm436 = vcmp.eq.s32.totalorder %v435, 1
  %v437 = vsel %vm436, %v424, %v229
  %v438 = vsel %vm436, %v418, %v230
  %v439 = vsel %vm436, %v424, 0.0
  %441 = vrot.lane.b32.xlu0 %v439, 32
  %v442 = vpop.permute.xlu0 %441
  %s444 = scalar_lea.vmem %s5, 8
  %445 = vst.msk [vmem:[%s444] sm:$0xff] %vm235, %v442
  %s446 = scalar_lea.vmem %s0, 8
  %v447 = vld [vmem:[%s446] sm:$0xf]
  %s448 = scalar_lea.vmem %s0, 20
  %v449 = vld [vmem:[%s448] sm:$0xf]
  %451 = vrot.lane.b32.xlu0 %v437, 48
  %v452 = vpop.permute.xlu0 %451
  %v454 = vsel %vm37, %v447, %v452
  %v456 = vsel %vm39, %v454, 0
  %458 = vmatprep.subr.mxu0 0.0
  %459 = vmatpush1.msra.mxu0 %v21
  %460 = vmatprep.subr.mxu0 0.0
  %461 = vmatpush1.msra.mxu0 %v22
  %462 = vmatprep.subr.mxu0 0.0
  %463 = vmatpush1.msra.mxu0 %v23
  %464 = vmatprep.subr.mxu0 0.0
  %465 = vmatpush1.msra.mxu0 %v24
  %466 = vmatprep.subr.mxu0 0.0
  %467 = vmatpush1.msra.mxu0 %v25
  %468 = vmatprep.subr.mxu0 0.0
  %469 = vmatpush1.msra.mxu0 %v26
  %470 = vmatprep.subr.mxu0 0.0
  %471 = vmatpush1.msra.mxu0 0.0
  %472 = vmatprep.subr.mxu0 0.0
  %473 = vmatpush1.msra.mxu0 0.0
  %474 = vmatprep.subr.mxu0 0.0
  %475 = vmatpush1.msra.mxu0 0.0
  %476 = vmatprep.subr.mxu0 0.0
  %477 = vmatpush1.msra.mxu0 0.0
  %478 = vmatprep.subr.mxu0 0.0
  %479 = vmatpush1.msra.mxu0 0.0
  %480 = vmatprep.subr.mxu0 0.0
  %481 = vmatpush1.msra.mxu0 0.0
  %482 = vmatprep.subr.mxu0 0.0
  %483 = vmatpush1.msra.mxu0 0.0
  %484 = vmatprep.subr.mxu0 0.0
  %485 = vmatpush1.msra.mxu0 0.0
  %486 = vmatprep.subr.mxu0 0.0
  %487 = vmatpush1.msra.mxu0 0.0
  %488 = vmatprep.subr.mxu0 0.0
  %489 = vmatpush1.msra.mxu0 0.0
  %490 = vmatprep.subr.mxu0 0.0
  %491 = vmatpush1.msra.mxu0 0.0
  %492 = vmatprep.subr.mxu0 0.0
  %493 = vmatpush1.msra.mxu0 0.0
  %494 = vmatprep.subr.mxu0 0.0
  %495 = vmatpush1.msra.mxu0 0.0
  %496 = vmatprep.subr.mxu0 0.0
  %497 = vmatpush1.msra.mxu0 0.0
  %498 = vmatprep.subr.mxu0 0.0
  %499 = vmatpush1.msra.mxu0 0.0
  %500 = vmatprep.subr.mxu0 0.0
  %501 = vmatpush1.msra.mxu0 0.0
  %502 = vmatprep.subr.mxu0 0.0
  %503 = vmatpush1.msra.mxu0 0.0
  %504 = vmatprep.subr.mxu0 0.0
  %505 = vmatpush1.msra.mxu0 0.0
  %506 = vmatprep.subr.mxu0 0.0
  %507 = vmatpush1.msra.mxu0 0.0
  %508 = vmatprep.subr.mxu0 0.0
  %509 = vmatpush1.msra.mxu0 0.0
  %510 = vmatprep.subr.mxu0 0.0
  %511 = vmatpush1.msra.mxu0 0.0
  %512 = vmatprep.subr.mxu0 0.0
  %513 = vmatpush1.msra.mxu0 0.0
  %514 = vmatprep.subr.mxu0 0.0
  %515 = vmatpush1.msra.mxu0 0.0
  %516 = vmatprep.subr.mxu0 0.0
  %517 = vmatpush1.msra.mxu0 0.0
  %518 = vmatprep.subr.mxu0 0.0
  %519 = vmatpush1.msra.mxu0 0.0
  %520 = vmatprep.subr.mxu0 0.0
  %521 = vmatpush1.msra.mxu0 0.0
  %522 = vmatprep.mubr.f32.mxu0 0.0
  %523 = vmatmul.mubr.f32.gmra.mrb[0].mxu0 %v456
  %v524 = vpop.f32.mrb[0].mxu0
  %v525 = vadd.f32 0.0, %v524
  %v526 = vpop.f32.mrb[0].mxu0
  %527 = vdwg.mxu0
  %v528 = vrot.slane %v437, 4
  %529 = vrot.lane.b32.xlu0 %v528, 48
  %v530 = vpop.permute.xlu0 %529
  %v532 = vsel %vm37, %v449, %v530
  %v534 = vsel %vm39, %v532, 0
  %536 = vmatprep.subr.mxu0 0.0
  %537 = vmatpush1.msra.mxu0 %v27
  %538 = vmatprep.subr.mxu0 0.0
  %539 = vmatpush1.msra.mxu0 %v28
  %540 = vmatprep.subr.mxu0 0.0
  %541 = vmatpush1.msra.mxu0 %v29
  %542 = vmatprep.subr.mxu0 0.0
  %543 = vmatpush1.msra.mxu0 %v30
  %544 = vmatprep.subr.mxu0 0.0
  %545 = vmatpush1.msra.mxu0 %v31
  %546 = vmatprep.subr.mxu0 0.0
  %547 = vmatpush1.msra.mxu0 %v32
  %548 = vmatprep.subr.mxu0 0.0
  %549 = vmatpush1.msra.mxu0 0.0
  %550 = vmatprep.subr.mxu0 0.0
  %551 = vmatpush1.msra.mxu0 0.0
  %552 = vmatprep.subr.mxu0 0.0
  %553 = vmatpush1.msra.mxu0 0.0
  %554 = vmatprep.subr.mxu0 0.0
  %555 = vmatpush1.msra.mxu0 0.0
  %556 = vmatprep.subr.mxu0 0.0
  %557 = vmatpush1.msra.mxu0 0.0
  %558 = vmatprep.subr.mxu0 0.0
  %559 = vmatpush1.msra.mxu0 0.0
  %560 = vmatprep.subr.mxu0 0.0
  %561 = vmatpush1.msra.mxu0 0.0
  %562 = vmatprep.subr.mxu0 0.0
  %563 = vmatpush1.msra.mxu0 0.0
  %564 = vmatprep.subr.mxu0 0.0
  %565 = vmatpush1.msra.mxu0 0.0
  %566 = vmatprep.subr.mxu0 0.0
  %567 = vmatpush1.msra.mxu0 0.0
  %568 = vmatprep.subr.mxu0 0.0
  %569 = vmatpush1.msra.mxu0 0.0
  %570 = vmatprep.subr.mxu0 0.0
  %571 = vmatpush1.msra.mxu0 0.0
  %572 = vmatprep.subr.mxu0 0.0
  %573 = vmatpush1.msra.mxu0 0.0
  %574 = vmatprep.subr.mxu0 0.0
  %575 = vmatpush1.msra.mxu0 0.0
  %576 = vmatprep.subr.mxu0 0.0
  %577 = vmatpush1.msra.mxu0 0.0
  %578 = vmatprep.subr.mxu0 0.0
  %579 = vmatpush1.msra.mxu0 0.0
  %580 = vmatprep.subr.mxu0 0.0
  %581 = vmatpush1.msra.mxu0 0.0
  %582 = vmatprep.subr.mxu0 0.0
  %583 = vmatpush1.msra.mxu0 0.0
  %584 = vmatprep.subr.mxu0 0.0
  %585 = vmatpush1.msra.mxu0 0.0
  %586 = vmatprep.subr.mxu0 0.0
  %587 = vmatpush1.msra.mxu0 0.0
  %588 = vmatprep.subr.mxu0 0.0
  %589 = vmatpush1.msra.mxu0 0.0
  %590 = vmatprep.subr.mxu0 0.0
  %591 = vmatpush1.msra.mxu0 0.0
  %592 = vmatprep.subr.mxu0 0.0
  %593 = vmatpush1.msra.mxu0 0.0
  %594 = vmatprep.subr.mxu0 0.0
  %595 = vmatpush1.msra.mxu0 0.0
  %596 = vmatprep.subr.mxu0 0.0
  %597 = vmatpush1.msra.mxu0 0.0
  %598 = vmatprep.subr.mxu0 0.0
  %599 = vmatpush1.msra.mxu0 0.0
  %600 = vmatprep.mubr.f32.mxu0 0.0
  %601 = vmatmul.mubr.f32.gmra.mrb[0].mxu0 %v534
  %v602 = vpop.f32.mrb[0].mxu0
  %v603 = vadd.f32 0.0, %v602
  %v604 = vpop.f32.mrb[0].mxu0
  %605 = vdwg.mxu0
  %v607 = vrot.slane %v603, 4
  %v609 = vsel %vm190, %v525, %v607
  %v610 = vadd.f32 %v609, %v33
  %v611 = vxor.u32 %v610, 2147483648
  %v612 = vmul.f32 %v611, 1.442695
  %v613 = vpow.pop %v612
  %v614 = vadd.f32 %v613, 1.0
  %v615 = vrcp.pop %v614
  %v616 = vmul.f32 1.0, %v615
  %v617 = vtanh.pop %v610
  %v618 = vmul.f32 %v616, %v438
  %620 = vrot.lane.b32.xlu0 %v617, 64
  %v621 = vpop.permute.xlu0 %620
  %v623 = vmul.f32 %v616, %v621
  %625 = vrot.lane.b32.xlu0 %v623, 32
  %v626 = vpop.permute.xlu0 %625
  %v628 = vadd.f32 %v618, %v626
  %v629 = vtanh.pop %v628
  %631 = vrot.lane.b32.xlu0 %v629, 64
  %v632 = vpop.permute.xlu0 %631
  %v634 = vmul.f32 %v616, %v632
  %vm635 = vcmp.le.s32.totalorder %v20, 2
  %vm636 = vcmp.gt.s32.totalorder %v20, 2
  %v637 = vsel %vm636, 1, 0
  %638 = vrot.lane.b32.xlu0 %v637, 127
  %v639 = vpop.permute.xlu0 %638
  %vm640 = vcmp.ne.s32.totalorder %v639, 0
  %vm641 = vmand %vm635, %vm640
  %v642 = vsel %vm641, 1, 0
  %643 = vset.pattern.permute.xlu0 0
  %644 = vperm.xlu0 %643, %v642
  %v645 = vpop.permute.xlu0 %644
  %vm646 = vcmp.eq.s32.totalorder %v645, 1
  %v647 = vsel %vm646, %v634, %v437
  %v648 = vsel %vm646, %v628, %v438
  %v649 = vsel %vm646, %v634, 0.0
  %651 = vrot.lane.b32.xlu0 %v649, 32
  %v652 = vpop.permute.xlu0 %651
  %s654 = scalar_lea.vmem %s5, 16
  %655 = vst.msk [vmem:[%s654] sm:$0xff] %vm235, %v652
  %s656 = scalar_lea.vmem %s0, 12
  %v657 = vld [vmem:[%s656] sm:$0xf]
  %s658 = scalar_lea.vmem %s0, 16
  %v659 = vld [vmem:[%s658] sm:$0xf]
  %661 = vrot.lane.b32.xlu0 %v647, 48
  %v662 = vpop.permute.xlu0 %661
  %v664 = vsel %vm37, %v657, %v662
  %v666 = vsel %vm39, %v664, 0
  %668 = vmatprep.subr.mxu0 0.0
  %669 = vmatpush1.msra.mxu0 %v21
  %670 = vmatprep.subr.mxu0 0.0
  %671 = vmatpush1.msra.mxu0 %v22
  %672 = vmatprep.subr.mxu0 0.0
  %673 = vmatpush1.msra.mxu0 %v23
  %674 = vmatprep.subr.mxu0 0.0
  %675 = vmatpush1.msra.mxu0 %v24
  %676 = vmatprep.subr.mxu0 0.0
  %677 = vmatpush1.msra.mxu0 %v25
  %678 = vmatprep.subr.mxu0 0.0
  %679 = vmatpush1.msra.mxu0 %v26
  %680 = vmatprep.subr.mxu0 0.0
  %681 = vmatpush1.msra.mxu0 0.0
  %682 = vmatprep.subr.mxu0 0.0
  %683 = vmatpush1.msra.mxu0 0.0
  %684 = vmatprep.subr.mxu0 0.0
  %685 = vmatpush1.msra.mxu0 0.0
  %686 = vmatprep.subr.mxu0 0.0
  %687 = vmatpush1.msra.mxu0 0.0
  %688 = vmatprep.subr.mxu0 0.0
  %689 = vmatpush1.msra.mxu0 0.0
  %690 = vmatprep.subr.mxu0 0.0
  %691 = vmatpush1.msra.mxu0 0.0
  %692 = vmatprep.subr.mxu0 0.0
  %693 = vmatpush1.msra.mxu0 0.0
  %694 = vmatprep.subr.mxu0 0.0
  %695 = vmatpush1.msra.mxu0 0.0
  %696 = vmatprep.subr.mxu0 0.0
  %697 = vmatpush1.msra.mxu0 0.0
  %698 = vmatprep.subr.mxu0 0.0
  %699 = vmatpush1.msra.mxu0 0.0
  %700 = vmatprep.subr.mxu0 0.0
  %701 = vmatpush1.msra.mxu0 0.0
  %702 = vmatprep.subr.mxu0 0.0
  %703 = vmatpush1.msra.mxu0 0.0
  %704 = vmatprep.subr.mxu0 0.0
  %705 = vmatpush1.msra.mxu0 0.0
  %706 = vmatprep.subr.mxu0 0.0
  %707 = vmatpush1.msra.mxu0 0.0
  %708 = vmatprep.subr.mxu0 0.0
  %709 = vmatpush1.msra.mxu0 0.0
  %710 = vmatprep.subr.mxu0 0.0
  %711 = vmatpush1.msra.mxu0 0.0
  %712 = vmatprep.subr.mxu0 0.0
  %713 = vmatpush1.msra.mxu0 0.0
  %714 = vmatprep.subr.mxu0 0.0
  %715 = vmatpush1.msra.mxu0 0.0
  %716 = vmatprep.subr.mxu0 0.0
  %717 = vmatpush1.msra.mxu0 0.0
  %718 = vmatprep.subr.mxu0 0.0
  %719 = vmatpush1.msra.mxu0 0.0
  %720 = vmatprep.subr.mxu0 0.0
  %721 = vmatpush1.msra.mxu0 0.0
  %722 = vmatprep.subr.mxu0 0.0
  %723 = vmatpush1.msra.mxu0 0.0
  %724 = vmatprep.subr.mxu0 0.0
  %725 = vmatpush1.msra.mxu0 0.0
  %726 = vmatprep.subr.mxu0 0.0
  %727 = vmatpush1.msra.mxu0 0.0
  %728 = vmatprep.subr.mxu0 0.0
  %729 = vmatpush1.msra.mxu0 0.0
  %730 = vmatprep.subr.mxu0 0.0
  %731 = vmatpush1.msra.mxu0 0.0
  %732 = vmatprep.mubr.f32.mxu0 0.0
  %733 = vmatmul.mubr.f32.gmra.mrb[0].mxu0 %v666
  %v734 = vpop.f32.mrb[0].mxu0
  %v735 = vadd.f32 0.0, %v734
  %v736 = vpop.f32.mrb[0].mxu0
  %737 = vdwg.mxu0
  %v738 = vrot.slane %v647, 4
  %739 = vrot.lane.b32.xlu0 %v738, 48
  %v740 = vpop.permute.xlu0 %739
  %v742 = vsel %vm37, %v659, %v740
  %v744 = vsel %vm39, %v742, 0
  %746 = vmatprep.subr.mxu0 0.0
  %747 = vmatpush1.msra.mxu0 %v27
  %748 = vmatprep.subr.mxu0 0.0
  %749 = vmatpush1.msra.mxu0 %v28
  %750 = vmatprep.subr.mxu0 0.0
  %751 = vmatpush1.msra.mxu0 %v29
  %752 = vmatprep.subr.mxu0 0.0
  %753 = vmatpush1.msra.mxu0 %v30
  %754 = vmatprep.subr.mxu0 0.0
  %755 = vmatpush1.msra.mxu0 %v31
  %756 = vmatprep.subr.mxu0 0.0
  %757 = vmatpush1.msra.mxu0 %v32
  %758 = vmatprep.subr.mxu0 0.0
  %759 = vmatpush1.msra.mxu0 0.0
  %760 = vmatprep.subr.mxu0 0.0
  %761 = vmatpush1.msra.mxu0 0.0
  %762 = vmatprep.subr.mxu0 0.0
  %763 = vmatpush1.msra.mxu0 0.0
  %764 = vmatprep.subr.mxu0 0.0
  %765 = vmatpush1.msra.mxu0 0.0
  %766 = vmatprep.subr.mxu0 0.0
  %767 = vmatpush1.msra.mxu0 0.0
  %768 = vmatprep.subr.mxu0 0.0
  %769 = vmatpush1.msra.mxu0 0.0
  %770 = vmatprep.subr.mxu0 0.0
  %771 = vmatpush1.msra.mxu0 0.0
  %772 = vmatprep.subr.mxu0 0.0
  %773 = vmatpush1.msra.mxu0 0.0
  %774 = vmatprep.subr.mxu0 0.0
  %775 = vmatpush1.msra.mxu0 0.0
  %776 = vmatprep.subr.mxu0 0.0
  %777 = vmatpush1.msra.mxu0 0.0
  %778 = vmatprep.subr.mxu0 0.0
  %779 = vmatpush1.msra.mxu0 0.0
  %780 = vmatprep.subr.mxu0 0.0
  %781 = vmatpush1.msra.mxu0 0.0
  %782 = vmatprep.subr.mxu0 0.0
  %783 = vmatpush1.msra.mxu0 0.0
  %784 = vmatprep.subr.mxu0 0.0
  %785 = vmatpush1.msra.mxu0 0.0
  %786 = vmatprep.subr.mxu0 0.0
  %787 = vmatpush1.msra.mxu0 0.0
  %788 = vmatprep.subr.mxu0 0.0
  %789 = vmatpush1.msra.mxu0 0.0
  %790 = vmatprep.subr.mxu0 0.0
  %791 = vmatpush1.msra.mxu0 0.0
  %792 = vmatprep.subr.mxu0 0.0
  %793 = vmatpush1.msra.mxu0 0.0
  %794 = vmatprep.subr.mxu0 0.0
  %795 = vmatpush1.msra.mxu0 0.0
  %796 = vmatprep.subr.mxu0 0.0
  %797 = vmatpush1.msra.mxu0 0.0
  %798 = vmatprep.subr.mxu0 0.0
  %799 = vmatpush1.msra.mxu0 0.0
  %800 = vmatprep.subr.mxu0 0.0
  %801 = vmatpush1.msra.mxu0 0.0
  %802 = vmatprep.subr.mxu0 0.0
  %803 = vmatpush1.msra.mxu0 0.0
  %804 = vmatprep.subr.mxu0 0.0
  %805 = vmatpush1.msra.mxu0 0.0
  %806 = vmatprep.subr.mxu0 0.0
  %807 = vmatpush1.msra.mxu0 0.0
  %808 = vmatprep.subr.mxu0 0.0
  %809 = vmatpush1.msra.mxu0 0.0
  %810 = vmatprep.mubr.f32.mxu0 0.0
  %811 = vmatmul.mubr.f32.gmra.mrb[0].mxu0 %v744
  %v812 = vpop.f32.mrb[0].mxu0
  %v813 = vadd.f32 0.0, %v812
  %v814 = vpop.f32.mrb[0].mxu0
  %815 = vdwg.mxu0
  %v817 = vrot.slane %v813, 4
  %v819 = vsel %vm190, %v735, %v817
  %v820 = vadd.f32 %v819, %v33
  %v821 = vxor.u32 %v820, 2147483648
  %v822 = vmul.f32 %v821, 1.442695
  %v823 = vpow.pop %v822
  %v824 = vadd.f32 %v823, 1.0
  %v825 = vrcp.pop %v824
  %v826 = vmul.f32 1.0, %v825
  %v827 = vtanh.pop %v820
  %v828 = vmul.f32 %v826, %v648
  %830 = vrot.lane.b32.xlu0 %v827, 64
  %v831 = vpop.permute.xlu0 %830
  %v833 = vmul.f32 %v826, %v831
  %835 = vrot.lane.b32.xlu0 %v833, 32
  %v836 = vpop.permute.xlu0 %835
  %v838 = vadd.f32 %v828, %v836
  %v839 = vtanh.pop %v838
  %841 = vrot.lane.b32.xlu0 %v839, 64
  %v842 = vpop.permute.xlu0 %841
  %v844 = vmul.f32 %v826, %v842
  %vm845 = vcmp.le.s32.totalorder %v20, 3
  %vm846 = vcmp.gt.s32.totalorder %v20, 3
  %v847 = vsel %vm846, 1, 0
  %848 = vrot.lane.b32.xlu0 %v847, 127
  %v849 = vpop.permute.xlu0 %848
  %vm850 = vcmp.ne.s32.totalorder %v849, 0
  %vm851 = vmand %vm845, %vm850
  %v852 = vsel %vm851, 1, 0
  %853 = vset.pattern.permute.xlu0 0
  %854 = vperm.xlu0 %853, %v852
  %v855 = vpop.permute.xlu0 %854
  %vm856 = vcmp.eq.s32.totalorder %v855, 1
  %v857 = vsel %vm856, %v844, %v647
  %v858 = vsel %vm856, %v838, %v648
  %v859 = vsel %vm856, %v844, 0.0
  %861 = vrot.lane.b32.xlu0 %v859, 32
  %v862 = vpop.permute.xlu0 %861
  %s864 = scalar_lea.vmem %s5, 24
  %865 = vst.msk [vmem:[%s864] sm:$0xff] %vm235, %v862
  %v866 = vld [vmem:[%s658] sm:$0xf]
  %v867 = vld [vmem:[%s656] sm:$0xf]
  %869 = vrot.lane.b32.xlu0 %v857, 48
  %v870 = vpop.permute.xlu0 %869
  %v872 = vsel %vm37, %v866, %v870
  %v874 = vsel %vm39, %v872, 0
  %876 = vmatprep.subr.mxu0 0.0
  %877 = vmatpush1.msra.mxu0 %v21
  %878 = vmatprep.subr.mxu0 0.0
  %879 = vmatpush1.msra.mxu0 %v22
  %880 = vmatprep.subr.mxu0 0.0
  %881 = vmatpush1.msra.mxu0 %v23
  %882 = vmatprep.subr.mxu0 0.0
  %883 = vmatpush1.msra.mxu0 %v24
  %884 = vmatprep.subr.mxu0 0.0
  %885 = vmatpush1.msra.mxu0 %v25
  %886 = vmatprep.subr.mxu0 0.0
  %887 = vmatpush1.msra.mxu0 %v26
  %888 = vmatprep.subr.mxu0 0.0
  %889 = vmatpush1.msra.mxu0 0.0
  %890 = vmatprep.subr.mxu0 0.0
  %891 = vmatpush1.msra.mxu0 0.0
  %892 = vmatprep.subr.mxu0 0.0
  %893 = vmatpush1.msra.mxu0 0.0
  %894 = vmatprep.subr.mxu0 0.0
  %895 = vmatpush1.msra.mxu0 0.0
  %896 = vmatprep.subr.mxu0 0.0
  %897 = vmatpush1.msra.mxu0 0.0
  %898 = vmatprep.subr.mxu0 0.0
  %899 = vmatpush1.msra.mxu0 0.0
  %900 = vmatprep.subr.mxu0 0.0
  %901 = vmatpush1.msra.mxu0 0.0
  %902 = vmatprep.subr.mxu0 0.0
  %903 = vmatpush1.msra.mxu0 0.0
  %904 = vmatprep.subr.mxu0 0.0
  %905 = vmatpush1.msra.mxu0 0.0
  %906 = vmatprep.subr.mxu0 0.0
  %907 = vmatpush1.msra.mxu0 0.0
  %908 = vmatprep.subr.mxu0 0.0
  %909 = vmatpush1.msra.mxu0 0.0
  %910 = vmatprep.subr.mxu0 0.0
  %911 = vmatpush1.msra.mxu0 0.0
  %912 = vmatprep.subr.mxu0 0.0
  %913 = vmatpush1.msra.mxu0 0.0
  %914 = vmatprep.subr.mxu0 0.0
  %915 = vmatpush1.msra.mxu0 0.0
  %916 = vmatprep.subr.mxu0 0.0
  %917 = vmatpush1.msra.mxu0 0.0
  %918 = vmatprep.subr.mxu0 0.0
  %919 = vmatpush1.msra.mxu0 0.0
  %920 = vmatprep.subr.mxu0 0.0
  %921 = vmatpush1.msra.mxu0 0.0
  %922 = vmatprep.subr.mxu0 0.0
  %923 = vmatpush1.msra.mxu0 0.0
  %924 = vmatprep.subr.mxu0 0.0
  %925 = vmatpush1.msra.mxu0 0.0
  %926 = vmatprep.subr.mxu0 0.0
  %927 = vmatpush1.msra.mxu0 0.0
  %928 = vmatprep.subr.mxu0 0.0
  %929 = vmatpush1.msra.mxu0 0.0
  %930 = vmatprep.subr.mxu0 0.0
  %931 = vmatpush1.msra.mxu0 0.0
  %932 = vmatprep.subr.mxu0 0.0
  %933 = vmatpush1.msra.mxu0 0.0
  %934 = vmatprep.subr.mxu0 0.0
  %935 = vmatpush1.msra.mxu0 0.0
  %936 = vmatprep.subr.mxu0 0.0
  %937 = vmatpush1.msra.mxu0 0.0
  %938 = vmatprep.subr.mxu0 0.0
  %939 = vmatpush1.msra.mxu0 0.0
  %940 = vmatprep.mubr.f32.mxu0 0.0
  %941 = vmatmul.mubr.f32.gmra.mrb[0].mxu0 %v874
  %v942 = vpop.f32.mrb[0].mxu0
  %v943 = vadd.f32 0.0, %v942
  %v944 = vpop.f32.mrb[0].mxu0
  %945 = vdwg.mxu0
  %v946 = vrot.slane %v857, 4
  %947 = vrot.lane.b32.xlu0 %v946, 48
  %v948 = vpop.permute.xlu0 %947
  %v950 = vsel %vm37, %v867, %v948
  %v952 = vsel %vm39, %v950, 0
  %954 = vmatprep.subr.mxu0 0.0
  %955 = vmatpush1.msra.mxu0 %v27
  %956 = vmatprep.subr.mxu0 0.0
  %957 = vmatpush1.msra.mxu0 %v28
  %958 = vmatprep.subr.mxu0 0.0
  %959 = vmatpush1.msra.mxu0 %v29
  %960 = vmatprep.subr.mxu0 0.0
  %961 = vmatpush1.msra.mxu0 %v30
  %962 = vmatprep.subr.mxu0 0.0
  %963 = vmatpush1.msra.mxu0 %v31
  %964 = vmatprep.subr.mxu0 0.0
  %965 = vmatpush1.msra.mxu0 %v32
  %966 = vmatprep.subr.mxu0 0.0
  %967 = vmatpush1.msra.mxu0 0.0
  %968 = vmatprep.subr.mxu0 0.0
  %969 = vmatpush1.msra.mxu0 0.0
  %970 = vmatprep.subr.mxu0 0.0
  %971 = vmatpush1.msra.mxu0 0.0
  %972 = vmatprep.subr.mxu0 0.0
  %973 = vmatpush1.msra.mxu0 0.0
  %974 = vmatprep.subr.mxu0 0.0
  %975 = vmatpush1.msra.mxu0 0.0
  %976 = vmatprep.subr.mxu0 0.0
  %977 = vmatpush1.msra.mxu0 0.0
  %978 = vmatprep.subr.mxu0 0.0
  %979 = vmatpush1.msra.mxu0 0.0
  %980 = vmatprep.subr.mxu0 0.0
  %981 = vmatpush1.msra.mxu0 0.0
  %982 = vmatprep.subr.mxu0 0.0
  %983 = vmatpush1.msra.mxu0 0.0
  %984 = vmatprep.subr.mxu0 0.0
  %985 = vmatpush1.msra.mxu0 0.0
  %986 = vmatprep.subr.mxu0 0.0
  %987 = vmatpush1.msra.mxu0 0.0
  %988 = vmatprep.subr.mxu0 0.0
  %989 = vmatpush1.msra.mxu0 0.0
  %990 = vmatprep.subr.mxu0 0.0
  %991 = vmatpush1.msra.mxu0 0.0
  %992 = vmatprep.subr.mxu0 0.0
  %993 = vmatpush1.msra.mxu0 0.0
  %994 = vmatprep.subr.mxu0 0.0
  %995 = vmatpush1.msra.mxu0 0.0
  %996 = vmatprep.subr.mxu0 0.0
  %997 = vmatpush1.msra.mxu0 0.0
  %998 = vmatprep.subr.mxu0 0.0
  %999 = vmatpush1.msra.mxu0 0.0
  %1000 = vmatprep.subr.mxu0 0.0
  %1001 = vmatpush1.msra.mxu0 0.0
  %1002 = vmatprep.subr.mxu0 0.0
  %1003 = vmatpush1.msra.mxu0 0.0
  %1004 = vmatprep.subr.mxu0 0.0
  %1005 = vmatpush1.msra.mxu0 0.0
  %1006 = vmatprep.subr.mxu0 0.0
  %1007 = vmatpush1.msra.mxu0 0.0
  %1008 = vmatprep.subr.mxu0 0.0
  %1009 = vmatpush1.msra.mxu0 0.0
  %1010 = vmatprep.subr.mxu0 0.0
  %1011 = vmatpush1.msra.mxu0 0.0
  %1012 = vmatprep.subr.mxu0 0.0
  %1013 = vmatpush1.msra.mxu0 0.0
  %1014 = vmatprep.subr.mxu0 0.0
  %1015 = vmatpush1.msra.mxu0 0.0
  %1016 = vmatprep.subr.mxu0 0.0
  %1017 = vmatpush1.msra.mxu0 0.0
  %1018 = vmatprep.mubr.f32.mxu0 0.0
  %1019 = vmatmul.mubr.f32.gmra.mrb[0].mxu0 %v952
  %v1020 = vpop.f32.mrb[0].mxu0
  %v1021 = vadd.f32 0.0, %v1020
  %v1022 = vpop.f32.mrb[0].mxu0
  %1023 = vdwg.mxu0
  %v1025 = vrot.slane %v1021, 4
  %v1027 = vsel %vm190, %v943, %v1025
  %v1028 = vadd.f32 %v1027, %v33
  %v1029 = vxor.u32 %v1028, 2147483648
  %v1030 = vmul.f32 %v1029, 1.442695
  %v1031 = vpow.pop %v1030
  %v1032 = vadd.f32 %v1031, 1.0
  %v1033 = vrcp.pop %v1032
  %v1034 = vmul.f32 1.0, %v1033
  %v1035 = vtanh.pop %v1028
  %v1036 = vmul.f32 %v1034, %v858
  %1038 = vrot.lane.b32.xlu0 %v1035, 64
  %v1039 = vpop.permute.xlu0 %1038
  %v1041 = vmul.f32 %v1034, %v1039
  %1043 = vrot.lane.b32.xlu0 %v1041, 32
  %v1044 = vpop.permute.xlu0 %1043
  %v1046 = vadd.f32 %v1036, %v1044
  %v1047 = vtanh.pop %v1046
  %1049 = vrot.lane.b32.xlu0 %v1047, 64
  %v1050 = vpop.permute.xlu0 %1049
  %v1052 = vmul.f32 %v1034, %v1050
  %vm1053 = vcmp.le.s32.totalorder %v20, 4
  %vm1054 = vcmp.gt.s32.totalorder %v20, 4
  %v1055 = vsel %vm1054, 1, 0
  %1056 = vrot.lane.b32.xlu0 %v1055, 127
  %v1057 = vpop.permute.xlu0 %1056
  %vm1058 = vcmp.ne.s32.totalorder %v1057, 0
  %vm1059 = vmand %vm1053, %vm1058
  %v1060 = vsel %vm1059, 1, 0
  %1061 = vset.pattern.permute.xlu0 0
  %1062 = vperm.xlu0 %1061, %v1060
  %v1063 = vpop.permute.xlu0 %1062
  %vm1064 = vcmp.eq.s32.totalorder %v1063, 1
  %v1065 = vsel %vm1064, %v1052, %v857
  %v1066 = vsel %vm1064, %v1046, %v858
  %v1067 = vsel %vm1064, %v1052, 0.0
  %1069 = vrot.lane.b32.xlu0 %v1067, 32
  %v1070 = vpop.permute.xlu0 %1069
  %s1072 = scalar_lea.vmem %s5, 32
  %1073 = vst.msk [vmem:[%s1072] sm:$0xff] %vm235, %v1070
  %v1074 = vld [vmem:[%s448] sm:$0xf]
  %v1075 = vld [vmem:[%s446] sm:$0xf]
  %1077 = vrot.lane.b32.xlu0 %v1065, 48
  %v1078 = vpop.permute.xlu0 %1077
  %v1080 = vsel %vm37, %v1074, %v1078
  %v1082 = vsel %vm39, %v1080, 0
  %1084 = vmatprep.subr.mxu0 0.0
  %1085 = vmatpush1.msra.mxu0 %v21
  %1086 = vmatprep.subr.mxu0 0.0
  %1087 = vmatpush1.msra.mxu0 %v22
  %1088 = vmatprep.subr.mxu0 0.0
  %1089 = vmatpush1.msra.mxu0 %v23
  %1090 = vmatprep.subr.mxu0 0.0
  %1091 = vmatpush1.msra.mxu0 %v24
  %1092 = vmatprep.subr.mxu0 0.0
  %1093 = vmatpush1.msra.mxu0 %v25
  %1094 = vmatprep.subr.mxu0 0.0
  %1095 = vmatpush1.msra.mxu0 %v26
  %1096 = vmatprep.subr.mxu0 0.0
  %1097 = vmatpush1.msra.mxu0 0.0
  %1098 = vmatprep.subr.mxu0 0.0
  %1099 = vmatpush1.msra.mxu0 0.0
  %1100 = vmatprep.subr.mxu0 0.0
  %1101 = vmatpush1.msra.mxu0 0.0
  %1102 = vmatprep.subr.mxu0 0.0
  %1103 = vmatpush1.msra.mxu0 0.0
  %1104 = vmatprep.subr.mxu0 0.0
  %1105 = vmatpush1.msra.mxu0 0.0
  %1106 = vmatprep.subr.mxu0 0.0
  %1107 = vmatpush1.msra.mxu0 0.0
  %1108 = vmatprep.subr.mxu0 0.0
  %1109 = vmatpush1.msra.mxu0 0.0
  %1110 = vmatprep.subr.mxu0 0.0
  %1111 = vmatpush1.msra.mxu0 0.0
  %1112 = vmatprep.subr.mxu0 0.0
  %1113 = vmatpush1.msra.mxu0 0.0
  %1114 = vmatprep.subr.mxu0 0.0
  %1115 = vmatpush1.msra.mxu0 0.0
  %1116 = vmatprep.subr.mxu0 0.0
  %1117 = vmatpush1.msra.mxu0 0.0
  %1118 = vmatprep.subr.mxu0 0.0
  %1119 = vmatpush1.msra.mxu0 0.0
  %1120 = vmatprep.subr.mxu0 0.0
  %1121 = vmatpush1.msra.mxu0 0.0
  %1122 = vmatprep.subr.mxu0 0.0
  %1123 = vmatpush1.msra.mxu0 0.0
  %1124 = vmatprep.subr.mxu0 0.0
  %1125 = vmatpush1.msra.mxu0 0.0
  %1126 = vmatprep.subr.mxu0 0.0
  %1127 = vmatpush1.msra.mxu0 0.0
  %1128 = vmatprep.subr.mxu0 0.0
  %1129 = vmatpush1.msra.mxu0 0.0
  %1130 = vmatprep.subr.mxu0 0.0
  %1131 = vmatpush1.msra.mxu0 0.0
  %1132 = vmatprep.subr.mxu0 0.0
  %1133 = vmatpush1.msra.mxu0 0.0
  %1134 = vmatprep.subr.mxu0 0.0
  %1135 = vmatpush1.msra.mxu0 0.0
  %1136 = vmatprep.subr.mxu0 0.0
  %1137 = vmatpush1.msra.mxu0 0.0
  %1138 = vmatprep.subr.mxu0 0.0
  %1139 = vmatpush1.msra.mxu0 0.0
  %1140 = vmatprep.subr.mxu0 0.0
  %1141 = vmatpush1.msra.mxu0 0.0
  %1142 = vmatprep.subr.mxu0 0.0
  %1143 = vmatpush1.msra.mxu0 0.0
  %1144 = vmatprep.subr.mxu0 0.0
  %1145 = vmatpush1.msra.mxu0 0.0
  %1146 = vmatprep.subr.mxu0 0.0
  %1147 = vmatpush1.msra.mxu0 0.0
  %1148 = vmatprep.mubr.f32.mxu0 0.0
  %1149 = vmatmul.mubr.f32.gmra.mrb[0].mxu0 %v1082
  %v1150 = vpop.f32.mrb[0].mxu0
  %v1151 = vadd.f32 0.0, %v1150
  %v1152 = vpop.f32.mrb[0].mxu0
  %1153 = vdwg.mxu0
  %v1154 = vrot.slane %v1065, 4
  %1155 = vrot.lane.b32.xlu0 %v1154, 48
  %v1156 = vpop.permute.xlu0 %1155
  %v1158 = vsel %vm37, %v1075, %v1156
  %v1160 = vsel %vm39, %v1158, 0
  %1162 = vmatprep.subr.mxu0 0.0
  %1163 = vmatpush1.msra.mxu0 %v27
  %1164 = vmatprep.subr.mxu0 0.0
  %1165 = vmatpush1.msra.mxu0 %v28
  %1166 = vmatprep.subr.mxu0 0.0
  %1167 = vmatpush1.msra.mxu0 %v29
  %1168 = vmatprep.subr.mxu0 0.0
  %1169 = vmatpush1.msra.mxu0 %v30
  %1170 = vmatprep.subr.mxu0 0.0
  %1171 = vmatpush1.msra.mxu0 %v31
  %1172 = vmatprep.subr.mxu0 0.0
  %1173 = vmatpush1.msra.mxu0 %v32
  %1174 = vmatprep.subr.mxu0 0.0
  %1175 = vmatpush1.msra.mxu0 0.0
  %1176 = vmatprep.subr.mxu0 0.0
  %1177 = vmatpush1.msra.mxu0 0.0
  %1178 = vmatprep.subr.mxu0 0.0
  %1179 = vmatpush1.msra.mxu0 0.0
  %1180 = vmatprep.subr.mxu0 0.0
  %1181 = vmatpush1.msra.mxu0 0.0
  %1182 = vmatprep.subr.mxu0 0.0
  %1183 = vmatpush1.msra.mxu0 0.0
  %1184 = vmatprep.subr.mxu0 0.0
  %1185 = vmatpush1.msra.mxu0 0.0
  %1186 = vmatprep.subr.mxu0 0.0
  %1187 = vmatpush1.msra.mxu0 0.0
  %1188 = vmatprep.subr.mxu0 0.0
  %1189 = vmatpush1.msra.mxu0 0.0
  %1190 = vmatprep.subr.mxu0 0.0
  %1191 = vmatpush1.msra.mxu0 0.0
  %1192 = vmatprep.subr.mxu0 0.0
  %1193 = vmatpush1.msra.mxu0 0.0
  %1194 = vmatprep.subr.mxu0 0.0
  %1195 = vmatpush1.msra.mxu0 0.0
  %1196 = vmatprep.subr.mxu0 0.0
  %1197 = vmatpush1.msra.mxu0 0.0
  %1198 = vmatprep.subr.mxu0 0.0
  %1199 = vmatpush1.msra.mxu0 0.0
  %1200 = vmatprep.subr.mxu0 0.0
  %1201 = vmatpush1.msra.mxu0 0.0
  %1202 = vmatprep.subr.mxu0 0.0
  %1203 = vmatpush1.msra.mxu0 0.0
  %1204 = vmatprep.subr.mxu0 0.0
  %1205 = vmatpush1.msra.mxu0 0.0
  %1206 = vmatprep.subr.mxu0 0.0
  %1207 = vmatpush1.msra.mxu0 0.0
  %1208 = vmatprep.subr.mxu0 0.0
  %1209 = vmatpush1.msra.mxu0 0.0
  %1210 = vmatprep.subr.mxu0 0.0
  %1211 = vmatpush1.msra.mxu0 0.0
  %1212 = vmatprep.subr.mxu0 0.0
  %1213 = vmatpush1.msra.mxu0 0.0
  %1214 = vmatprep.subr.mxu0 0.0
  %1215 = vmatpush1.msra.mxu0 0.0
  %1216 = vmatprep.subr.mxu0 0.0
  %1217 = vmatpush1.msra.mxu0 0.0
  %1218 = vmatprep.subr.mxu0 0.0
  %1219 = vmatpush1.msra.mxu0 0.0
  %1220 = vmatprep.subr.mxu0 0.0
  %1221 = vmatpush1.msra.mxu0 0.0
  %1222 = vmatprep.subr.mxu0 0.0
  %1223 = vmatpush1.msra.mxu0 0.0
  %1224 = vmatprep.subr.mxu0 0.0
  %1225 = vmatpush1.msra.mxu0 0.0
  %1226 = vmatprep.mubr.f32.mxu0 0.0
  %1227 = vmatmul.mubr.f32.gmra.mrb[0].mxu0 %v1160
  %v1228 = vpop.f32.mrb[0].mxu0
  %v1229 = vadd.f32 0.0, %v1228
  %v1230 = vpop.f32.mrb[0].mxu0
  %1231 = vdwg.mxu0
  %v1233 = vrot.slane %v1229, 4
  %v1235 = vsel %vm190, %v1151, %v1233
  %v1236 = vadd.f32 %v1235, %v33
  %v1237 = vxor.u32 %v1236, 2147483648
  %v1238 = vmul.f32 %v1237, 1.442695
  %v1239 = vpow.pop %v1238
  %v1240 = vadd.f32 %v1239, 1.0
  %v1241 = vrcp.pop %v1240
  %v1242 = vmul.f32 1.0, %v1241
  %v1243 = vtanh.pop %v1236
  %v1244 = vmul.f32 %v1242, %v1066
  %1246 = vrot.lane.b32.xlu0 %v1243, 64
  %v1247 = vpop.permute.xlu0 %1246
  %v1249 = vmul.f32 %v1242, %v1247
  %1251 = vrot.lane.b32.xlu0 %v1249, 32
  %v1252 = vpop.permute.xlu0 %1251
  %v1254 = vadd.f32 %v1244, %v1252
  %v1255 = vtanh.pop %v1254
  %1257 = vrot.lane.b32.xlu0 %v1255, 64
  %v1258 = vpop.permute.xlu0 %1257
  %v1260 = vmul.f32 %v1242, %v1258
  %vm1261 = vcmp.le.s32.totalorder %v20, 5
  %vm1262 = vcmp.gt.s32.totalorder %v20, 5
  %v1263 = vsel %vm1262, 1, 0
  %1264 = vrot.lane.b32.xlu0 %v1263, 127
  %v1265 = vpop.permute.xlu0 %1264
  %vm1266 = vcmp.ne.s32.totalorder %v1265, 0
  %vm1267 = vmand %vm1261, %vm1266
  %v1268 = vsel %vm1267, 1, 0
  %1269 = vset.pattern.permute.xlu0 0
  %1270 = vperm.xlu0 %1269, %v1268
  %v1271 = vpop.permute.xlu0 %1270
  %vm1272 = vcmp.eq.s32.totalorder %v1271, 1
  %v1273 = vsel %vm1272, %v1260, %v1065
  %v1274 = vsel %vm1272, %v1254, %v1066
  %v1275 = vsel %vm1272, %v1260, 0.0
  %1277 = vrot.lane.b32.xlu0 %v1275, 32
  %v1278 = vpop.permute.xlu0 %1277
  %s1280 = scalar_lea.vmem %s5, 40
  %1281 = vst.msk [vmem:[%s1280] sm:$0xff] %vm235, %v1278
  %v1282 = vld [vmem:[%s239] sm:$0xf]
  %v1283 = vld [vmem:[%s237] sm:$0xf]
  %1285 = vrot.lane.b32.xlu0 %v1273, 48
  %v1286 = vpop.permute.xlu0 %1285
  %v1288 = vsel %vm37, %v1282, %v1286
  %v1290 = vsel %vm39, %v1288, 0
  %1292 = vmatprep.subr.mxu0 0.0
  %1293 = vmatpush1.msra.mxu0 %v21
  %1294 = vmatprep.subr.mxu0 0.0
  %1295 = vmatpush1.msra.mxu0 %v22
  %1296 = vmatprep.subr.mxu0 0.0
  %1297 = vmatpush1.msra.mxu0 %v23
  %1298 = vmatprep.subr.mxu0 0.0
  %1299 = vmatpush1.msra.mxu0 %v24
  %1300 = vmatprep.subr.mxu0 0.0
  %1301 = vmatpush1.msra.mxu0 %v25
  %1302 = vmatprep.subr.mxu0 0.0
  %1303 = vmatpush1.msra.mxu0 %v26
  %1304 = vmatprep.subr.mxu0 0.0
  %1305 = vmatpush1.msra.mxu0 0.0
  %1306 = vmatprep.subr.mxu0 0.0
  %1307 = vmatpush1.msra.mxu0 0.0
  %1308 = vmatprep.subr.mxu0 0.0
  %1309 = vmatpush1.msra.mxu0 0.0
  %1310 = vmatprep.subr.mxu0 0.0
  %1311 = vmatpush1.msra.mxu0 0.0
  %1312 = vmatprep.subr.mxu0 0.0
  %1313 = vmatpush1.msra.mxu0 0.0
  %1314 = vmatprep.subr.mxu0 0.0
  %1315 = vmatpush1.msra.mxu0 0.0
  %1316 = vmatprep.subr.mxu0 0.0
  %1317 = vmatpush1.msra.mxu0 0.0
  %1318 = vmatprep.subr.mxu0 0.0
  %1319 = vmatpush1.msra.mxu0 0.0
  %1320 = vmatprep.subr.mxu0 0.0
  %1321 = vmatpush1.msra.mxu0 0.0
  %1322 = vmatprep.subr.mxu0 0.0
  %1323 = vmatpush1.msra.mxu0 0.0
  %1324 = vmatprep.subr.mxu0 0.0
  %1325 = vmatpush1.msra.mxu0 0.0
  %1326 = vmatprep.subr.mxu0 0.0
  %1327 = vmatpush1.msra.mxu0 0.0
  %1328 = vmatprep.subr.mxu0 0.0
  %1329 = vmatpush1.msra.mxu0 0.0
  %1330 = vmatprep.subr.mxu0 0.0
  %1331 = vmatpush1.msra.mxu0 0.0
  %1332 = vmatprep.subr.mxu0 0.0
  %1333 = vmatpush1.msra.mxu0 0.0
  %1334 = vmatprep.subr.mxu0 0.0
  %1335 = vmatpush1.msra.mxu0 0.0
  %1336 = vmatprep.subr.mxu0 0.0
  %1337 = vmatpush1.msra.mxu0 0.0
  %1338 = vmatprep.subr.mxu0 0.0
  %1339 = vmatpush1.msra.mxu0 0.0
  %1340 = vmatprep.subr.mxu0 0.0
  %1341 = vmatpush1.msra.mxu0 0.0
  %1342 = vmatprep.subr.mxu0 0.0
  %1343 = vmatpush1.msra.mxu0 0.0
  %1344 = vmatprep.subr.mxu0 0.0
  %1345 = vmatpush1.msra.mxu0 0.0
  %1346 = vmatprep.subr.mxu0 0.0
  %1347 = vmatpush1.msra.mxu0 0.0
  %1348 = vmatprep.subr.mxu0 0.0
  %1349 = vmatpush1.msra.mxu0 0.0
  %1350 = vmatprep.subr.mxu0 0.0
  %1351 = vmatpush1.msra.mxu0 0.0
  %1352 = vmatprep.subr.mxu0 0.0
  %1353 = vmatpush1.msra.mxu0 0.0
  %1354 = vmatprep.subr.mxu0 0.0
  %1355 = vmatpush1.msra.mxu0 0.0
  %1356 = vmatprep.mubr.f32.mxu0 0.0
  %1357 = vmatmul.mubr.f32.gmra.mrb[0].mxu0 %v1290
  %v1358 = vpop.f32.mrb[0].mxu0
  %v1359 = vadd.f32 0.0, %v1358
  %v1360 = vpop.f32.mrb[0].mxu0
  %1361 = vdwg.mxu0
  %v1362 = vrot.slane %v1273, 4
  %1363 = vrot.lane.b32.xlu0 %v1362, 48
  %v1364 = vpop.permute.xlu0 %1363
  %v1366 = vsel %vm37, %v1283, %v1364
  %v1368 = vsel %vm39, %v1366, 0
  %1370 = vmatprep.subr.mxu0 0.0
  %1371 = vmatpush1.msra.mxu0 %v27
  %1372 = vmatprep.subr.mxu0 0.0
  %1373 = vmatpush1.msra.mxu0 %v28
  %1374 = vmatprep.subr.mxu0 0.0
  %1375 = vmatpush1.msra.mxu0 %v29
  %1376 = vmatprep.subr.mxu0 0.0
  %1377 = vmatpush1.msra.mxu0 %v30
  %1378 = vmatprep.subr.mxu0 0.0
  %1379 = vmatpush1.msra.mxu0 %v31
  %1380 = vmatprep.subr.mxu0 0.0
  %1381 = vmatpush1.msra.mxu0 %v32
  %1382 = vmatprep.subr.mxu0 0.0
  %1383 = vmatpush1.msra.mxu0 0.0
  %1384 = vmatprep.subr.mxu0 0.0
  %1385 = vmatpush1.msra.mxu0 0.0
  %1386 = vmatprep.subr.mxu0 0.0
  %1387 = vmatpush1.msra.mxu0 0.0
  %1388 = vmatprep.subr.mxu0 0.0
  %1389 = vmatpush1.msra.mxu0 0.0
  %1390 = vmatprep.subr.mxu0 0.0
  %1391 = vmatpush1.msra.mxu0 0.0
  %1392 = vmatprep.subr.mxu0 0.0
  %1393 = vmatpush1.msra.mxu0 0.0
  %1394 = vmatprep.subr.mxu0 0.0
  %1395 = vmatpush1.msra.mxu0 0.0
  %1396 = vmatprep.subr.mxu0 0.0
  %1397 = vmatpush1.msra.mxu0 0.0
  %1398 = vmatprep.subr.mxu0 0.0
  %1399 = vmatpush1.msra.mxu0 0.0
  %1400 = vmatprep.subr.mxu0 0.0
  %1401 = vmatpush1.msra.mxu0 0.0
  %1402 = vmatprep.subr.mxu0 0.0
  %1403 = vmatpush1.msra.mxu0 0.0
  %1404 = vmatprep.subr.mxu0 0.0
  %1405 = vmatpush1.msra.mxu0 0.0
  %1406 = vmatprep.subr.mxu0 0.0
  %1407 = vmatpush1.msra.mxu0 0.0
  %1408 = vmatprep.subr.mxu0 0.0
  %1409 = vmatpush1.msra.mxu0 0.0
  %1410 = vmatprep.subr.mxu0 0.0
  %1411 = vmatpush1.msra.mxu0 0.0
  %1412 = vmatprep.subr.mxu0 0.0
  %1413 = vmatpush1.msra.mxu0 0.0
  %1414 = vmatprep.subr.mxu0 0.0
  %1415 = vmatpush1.msra.mxu0 0.0
  %1416 = vmatprep.subr.mxu0 0.0
  %1417 = vmatpush1.msra.mxu0 0.0
  %1418 = vmatprep.subr.mxu0 0.0
  %1419 = vmatpush1.msra.mxu0 0.0
  %1420 = vmatprep.subr.mxu0 0.0
  %1421 = vmatpush1.msra.mxu0 0.0
  %1422 = vmatprep.subr.mxu0 0.0
  %1423 = vmatpush1.msra.mxu0 0.0
  %1424 = vmatprep.subr.mxu0 0.0
  %1425 = vmatpush1.msra.mxu0 0.0
  %1426 = vmatprep.subr.mxu0 0.0
  %1427 = vmatpush1.msra.mxu0 0.0
  %1428 = vmatprep.subr.mxu0 0.0
  %1429 = vmatpush1.msra.mxu0 0.0
  %1430 = vmatprep.subr.mxu0 0.0
  %1431 = vmatpush1.msra.mxu0 0.0
  %1432 = vmatprep.subr.mxu0 0.0
  %1433 = vmatpush1.msra.mxu0 0.0
  %1434 = vmatprep.mubr.f32.mxu0 0.0
  %1435 = vmatmul.mubr.f32.gmra.mrb[0].mxu0 %v1368
  %v1436 = vpop.f32.mrb[0].mxu0
  %v1437 = vadd.f32 0.0, %v1436
  %v1438 = vpop.f32.mrb[0].mxu0
  %1439 = vdwg.mxu0
  %v1441 = vrot.slane %v1437, 4
  %v1443 = vsel %vm190, %v1359, %v1441
  %v1444 = vadd.f32 %v1443, %v33
  %v1445 = vxor.u32 %v1444, 2147483648
  %v1446 = vmul.f32 %v1445, 1.442695
  %v1447 = vpow.pop %v1446
  %v1448 = vadd.f32 %v1447, 1.0
  %v1449 = vrcp.pop %v1448
  %v1450 = vmul.f32 1.0, %v1449
  %v1451 = vtanh.pop %v1444
  %v1452 = vmul.f32 %v1450, %v1274
  %1454 = vrot.lane.b32.xlu0 %v1451, 64
  %v1455 = vpop.permute.xlu0 %1454
  %v1457 = vmul.f32 %v1450, %v1455
  %1459 = vrot.lane.b32.xlu0 %v1457, 32
  %v1460 = vpop.permute.xlu0 %1459
  %v1462 = vadd.f32 %v1452, %v1460
  %v1463 = vtanh.pop %v1462
  %1465 = vrot.lane.b32.xlu0 %v1463, 64
  %v1466 = vpop.permute.xlu0 %1465
  %v1468 = vmul.f32 %v1450, %v1466
  %vm1469 = vcmp.le.s32.totalorder %v20, 6
  %vm1470 = vcmp.gt.s32.totalorder %v20, 6
  %v1471 = vsel %vm1470, 1, 0
  %1472 = vrot.lane.b32.xlu0 %v1471, 127
  %v1473 = vpop.permute.xlu0 %1472
  %vm1474 = vcmp.ne.s32.totalorder %v1473, 0
  %vm1475 = vmand %vm1469, %vm1474
  %v1476 = vsel %vm1475, 1, 0
  %1477 = vset.pattern.permute.xlu0 0
  %1478 = vperm.xlu0 %1477, %v1476
  %v1479 = vpop.permute.xlu0 %1478
  %vm1480 = vcmp.eq.s32.totalorder %v1479, 1
  %v1481 = vsel %vm1480, %v1468, %v1273
  %v1482 = vsel %vm1480, %v1462, %v1274
  %v1483 = vsel %vm1480, %v1468, 0.0
  %1485 = vrot.lane.b32.xlu0 %v1483, 32
  %v1486 = vpop.permute.xlu0 %1485
  %s1488 = scalar_lea.vmem %s5, 48
  %1489 = vst.msk [vmem:[%s1488] sm:$0xff] %vm235, %v1486
  %v1490 = vld [vmem:[%s35] sm:$0xf]
  %v1491 = vld [vmem:[%s0] sm:$0xf]
  %1493 = vrot.lane.b32.xlu0 %v1481, 48
  %v1494 = vpop.permute.xlu0 %1493
  %v1496 = vsel %vm37, %v1490, %v1494
  %v1498 = vsel %vm39, %v1496, 0
  %1500 = vmatprep.subr.mxu0 0.0
  %1501 = vmatpush1.msra.mxu0 %v21
  %1502 = vmatprep.subr.mxu0 0.0
  %1503 = vmatpush1.msra.mxu0 %v22
  %1504 = vmatprep.subr.mxu0 0.0
  %1505 = vmatpush1.msra.mxu0 %v23
  %1506 = vmatprep.subr.mxu0 0.0
  %1507 = vmatpush1.msra.mxu0 %v24
  %1508 = vmatprep.subr.mxu0 0.0
  %1509 = vmatpush1.msra.mxu0 %v25
  %1510 = vmatprep.subr.mxu0 0.0
  %1511 = vmatpush1.msra.mxu0 %v26
  %1512 = vmatprep.subr.mxu0 0.0
  %1513 = vmatpush1.msra.mxu0 0.0
  %1514 = vmatprep.subr.mxu0 0.0
  %1515 = vmatpush1.msra.mxu0 0.0
  %1516 = vmatprep.subr.mxu0 0.0
  %1517 = vmatpush1.msra.mxu0 0.0
  %1518 = vmatprep.subr.mxu0 0.0
  %1519 = vmatpush1.msra.mxu0 0.0
  %1520 = vmatprep.subr.mxu0 0.0
  %1521 = vmatpush1.msra.mxu0 0.0
  %1522 = vmatprep.subr.mxu0 0.0
  %1523 = vmatpush1.msra.mxu0 0.0
  %1524 = vmatprep.subr.mxu0 0.0
  %1525 = vmatpush1.msra.mxu0 0.0
  %1526 = vmatprep.subr.mxu0 0.0
  %1527 = vmatpush1.msra.mxu0 0.0
  %1528 = vmatprep.subr.mxu0 0.0
  %1529 = vmatpush1.msra.mxu0 0.0
  %1530 = vmatprep.subr.mxu0 0.0
  %1531 = vmatpush1.msra.mxu0 0.0
  %1532 = vmatprep.subr.mxu0 0.0
  %1533 = vmatpush1.msra.mxu0 0.0
  %1534 = vmatprep.subr.mxu0 0.0
  %1535 = vmatpush1.msra.mxu0 0.0
  %1536 = vmatprep.subr.mxu0 0.0
  %1537 = vmatpush1.msra.mxu0 0.0
  %1538 = vmatprep.subr.mxu0 0.0
  %1539 = vmatpush1.msra.mxu0 0.0
  %1540 = vmatprep.subr.mxu0 0.0
  %1541 = vmatpush1.msra.mxu0 0.0
  %1542 = vmatprep.subr.mxu0 0.0
  %1543 = vmatpush1.msra.mxu0 0.0
  %1544 = vmatprep.subr.mxu0 0.0
  %1545 = vmatpush1.msra.mxu0 0.0
  %1546 = vmatprep.subr.mxu0 0.0
  %1547 = vmatpush1.msra.mxu0 0.0
  %1548 = vmatprep.subr.mxu0 0.0
  %1549 = vmatpush1.msra.mxu0 0.0
  %1550 = vmatprep.subr.mxu0 0.0
  %1551 = vmatpush1.msra.mxu0 0.0
  %1552 = vmatprep.subr.mxu0 0.0
  %1553 = vmatpush1.msra.mxu0 0.0
  %1554 = vmatprep.subr.mxu0 0.0
  %1555 = vmatpush1.msra.mxu0 0.0
  %1556 = vmatprep.subr.mxu0 0.0
  %1557 = vmatpush1.msra.mxu0 0.0
  %1558 = vmatprep.subr.mxu0 0.0
  %1559 = vmatpush1.msra.mxu0 0.0
  %1560 = vmatprep.subr.mxu0 0.0
  %1561 = vmatpush1.msra.mxu0 0.0
  %1562 = vmatprep.subr.mxu0 0.0
  %1563 = vmatpush1.msra.mxu0 0.0
  %1564 = vmatprep.mubr.f32.mxu0 0.0
  %1565 = vmatmul.mubr.f32.gmra.mrb[0].mxu0 %v1498
  %v1566 = vpop.f32.mrb[0].mxu0
  %v1567 = vadd.f32 0.0, %v1566
  %v1568 = vpop.f32.mrb[0].mxu0
  %1569 = vdwg.mxu0
  %v1570 = vrot.slane %v1481, 4
  %1571 = vrot.lane.b32.xlu0 %v1570, 48
  %v1572 = vpop.permute.xlu0 %1571
  %v1574 = vsel %vm37, %v1491, %v1572
  %v1576 = vsel %vm39, %v1574, 0
  %1578 = vmatprep.subr.mxu0 0.0
  %1579 = vmatpush1.msra.mxu0 %v27
  %1580 = vmatprep.subr.mxu0 0.0
  %1581 = vmatpush1.msra.mxu0 %v28
  %1582 = vmatprep.subr.mxu0 0.0
  %1583 = vmatpush1.msra.mxu0 %v29
  %1584 = vmatprep.subr.mxu0 0.0
  %1585 = vmatpush1.msra.mxu0 %v30
  %1586 = vmatprep.subr.mxu0 0.0
  %1587 = vmatpush1.msra.mxu0 %v31
  %1588 = vmatprep.subr.mxu0 0.0
  %1589 = vmatpush1.msra.mxu0 %v32
  %1590 = vmatprep.subr.mxu0 0.0
  %1591 = vmatpush1.msra.mxu0 0.0
  %1592 = vmatprep.subr.mxu0 0.0
  %1593 = vmatpush1.msra.mxu0 0.0
  %1594 = vmatprep.subr.mxu0 0.0
  %1595 = vmatpush1.msra.mxu0 0.0
  %1596 = vmatprep.subr.mxu0 0.0
  %1597 = vmatpush1.msra.mxu0 0.0
  %1598 = vmatprep.subr.mxu0 0.0
  %1599 = vmatpush1.msra.mxu0 0.0
  %1600 = vmatprep.subr.mxu0 0.0
  %1601 = vmatpush1.msra.mxu0 0.0
  %1602 = vmatprep.subr.mxu0 0.0
  %1603 = vmatpush1.msra.mxu0 0.0
  %1604 = vmatprep.subr.mxu0 0.0
  %1605 = vmatpush1.msra.mxu0 0.0
  %1606 = vmatprep.subr.mxu0 0.0
  %1607 = vmatpush1.msra.mxu0 0.0
  %1608 = vmatprep.subr.mxu0 0.0
  %1609 = vmatpush1.msra.mxu0 0.0
  %1610 = vmatprep.subr.mxu0 0.0
  %1611 = vmatpush1.msra.mxu0 0.0
  %1612 = vmatprep.subr.mxu0 0.0
  %1613 = vmatpush1.msra.mxu0 0.0
  %1614 = vmatprep.subr.mxu0 0.0
  %1615 = vmatpush1.msra.mxu0 0.0
  %1616 = vmatprep.subr.mxu0 0.0
  %1617 = vmatpush1.msra.mxu0 0.0
  %1618 = vmatprep.subr.mxu0 0.0
  %1619 = vmatpush1.msra.mxu0 0.0
  %1620 = vmatprep.subr.mxu0 0.0
  %1621 = vmatpush1.msra.mxu0 0.0
  %1622 = vmatprep.subr.mxu0 0.0
  %1623 = vmatpush1.msra.mxu0 0.0
  %1624 = vmatprep.subr.mxu0 0.0
  %1625 = vmatpush1.msra.mxu0 0.0
  %1626 = vmatprep.subr.mxu0 0.0
  %1627 = vmatpush1.msra.mxu0 0.0
  %1628 = vmatprep.subr.mxu0 0.0
  %1629 = vmatpush1.msra.mxu0 0.0
  %1630 = vmatprep.subr.mxu0 0.0
  %1631 = vmatpush1.msra.mxu0 0.0
  %1632 = vmatprep.subr.mxu0 0.0
  %1633 = vmatpush1.msra.mxu0 0.0
  %1634 = vmatprep.subr.mxu0 0.0
  %1635 = vmatpush1.msra.mxu0 0.0
  %1636 = vmatprep.subr.mxu0 0.0
  %1637 = vmatpush1.msra.mxu0 0.0
  %1638 = vmatprep.subr.mxu0 0.0
  %1639 = vmatpush1.msra.mxu0 0.0
  %1640 = vmatprep.subr.mxu0 0.0
  %1641 = vmatpush1.msra.mxu0 0.0
  %1642 = vmatprep.mubr.f32.mxu0 0.0
  %1643 = vmatmul.mubr.f32.gmra.mrb[0].mxu0 %v1576
  %v1644 = vpop.f32.mrb[0].mxu0
  %v1645 = vadd.f32 0.0, %v1644
  %v1646 = vpop.f32.mrb[0].mxu0
  %1647 = vdwg.mxu0
  %v1649 = vrot.slane %v1645, 4
  %v1651 = vsel %vm190, %v1567, %v1649
  %v1652 = vadd.f32 %v1651, %v33
  %v1653 = vxor.u32 %v1652, 2147483648
  %v1654 = vmul.f32 %v1653, 1.442695
  %v1655 = vpow.pop %v1654
  %v1656 = vadd.f32 %v1655, 1.0
  %v1657 = vrcp.pop %v1656
  %v1658 = vmul.f32 1.0, %v1657
  %v1659 = vtanh.pop %v1652
  %v1660 = vmul.f32 %v1658, %v1482
  %1662 = vrot.lane.b32.xlu0 %v1659, 64
  %v1663 = vpop.permute.xlu0 %1662
  %v1665 = vmul.f32 %v1658, %v1663
  %1667 = vrot.lane.b32.xlu0 %v1665, 32
  %v1668 = vpop.permute.xlu0 %1667
  %v1670 = vadd.f32 %v1660, %v1668
  %v1671 = vtanh.pop %v1670
  %1673 = vrot.lane.b32.xlu0 %v1671, 64
  %v1674 = vpop.permute.xlu0 %1673
  %v1676 = vmul.f32 %v1658, %v1674
  %vm1677 = vcmp.le.s32.totalorder %v20, 7
  %vm1678 = vcmp.gt.s32.totalorder %v20, 7
  %v1679 = vsel %vm1678, 1, 0
  %1680 = vrot.lane.b32.xlu0 %v1679, 127
  %v1681 = vpop.permute.xlu0 %1680
  %vm1682 = vcmp.ne.s32.totalorder %v1681, 0
  %vm1683 = vmand %vm1677, %vm1682
  %v1684 = vsel %vm1683, 1, 0
  %1685 = vset.pattern.permute.xlu0 0
  %1686 = vperm.xlu0 %1685, %v1684
  %v1687 = vpop.permute.xlu0 %1686
  %vm1688 = vcmp.eq.s32.totalorder %v1687, 1
  %v1689 = vsel %vm1688, %v1676, 0.0
  %1691 = vrot.lane.b32.xlu0 %v1689, 32
  %v1692 = vpop.permute.xlu0 %1691
  %s1694 = scalar_lea.vmem %s5, 56
  %1695 = vst.msk [vmem:[%s1694] sm:$0xff] %vm235, %v1692
  // Predicated region
  $region22: #{sentence_rnn_forward.1} parent=0 // pred_check
    _
  $region23: #{sentence_rnn_forward.1} parent=0 // pred_check_branch
    %1697 = sbr.rel (0) target = $region25
  $region24: #{sentence_rnn_forward.1} parent=0 // pred_region
    _
  $region25: #{sentence_rnn_forward.1} parent=0 // pred_fallthru
    _
  // Predicated region
  $region26: #{sentence_rnn_forward.1} parent=0 // pred_check
    _
  $region27: #{sentence_rnn_forward.1} parent=0 // pred_check_branch
    %1699 = sbr.rel (0) target = $region29
  $region28: #{sentence_rnn_forward.1} parent=0 // pred_region
    _
  $region29: #{sentence_rnn_forward.1} parent=0 // pred_fallthru
    _

</llo_original>
